<compile_context>
chip_gen: v7x
topology: tpu7x:2x2x1
jax: 0.10.0
libtpu: 0.0.40
codegen_flags: <defaults>
</compile_context>

<pallas_src>
import functools

import jax
import jax.numpy as jnp
from jax.experimental import pallas as pl
from jax.experimental.pallas import tpu as pltpu


def cnn_maxpool_kernel(x_ref, w_ref, b_ref, o_ref, *, window_size, num_win,
                       c_pad):
    # x_ref: (TB, S, D_pad)          -- one batch tile
    # w_ref: (D_pad, window*C_pad)   -- W_flat[d, k*C_pad + c] = W[k, d, c]
    # b_ref: (1, C_pad)
    # o_ref: (TB, C_pad)
    x = x_ref[...]                                       # f32

    # Single MXU contraction: contract D, window folded into the N axis.
    y = jnp.einsum("bsd,dk->bsk", x, w_ref[...],
                   preferred_element_type=jnp.float32)   # (TB, S, window*C_pad)

    # Sliding-window sum assembled from shifted slices of the small f32 result.
    # Column slices start at multiples of C_pad (=128) -> lane aligned.
    acc = y[:, 0:num_win, 0:c_pad]                       # (TB, num_win, C_pad)
    for k in range(1, window_size):                      # static, tiny unroll
        acc = acc + y[:, k:k + num_win, k * c_pad:(k + 1) * c_pad]

    # Max over window positions first, then add bias once (bias is constant
    # along the window axis, so this is exactly equivalent to conv-bias-max).
    pooled = jnp.max(acc, axis=1)                        # (TB, C_pad)
    o_ref[...] = (pooled + b_ref[...]).astype(o_ref.dtype)


def _round_up(v, m):
    return ((v + m - 1) // m) * m


def cnn_max_pooling(x, weight, bias, *, window_size, block_b=16):
    """x: (B, S, D) f32; weight: (window, D, C); bias: (C,) -> (B, C) f32."""
    B, S, D = x.shape
    C = weight.shape[-1]
    if S < window_size:
        raise ValueError("seq_len must be >= window_size")
    num_win = S - window_size + 1

    # Lane-dense padding for MXU operands and the output store.
    Dp = _round_up(D, 128)
    Cp = _round_up(C, 128)
    TB = min(block_b, _round_up(B, 8))
    Bp = _round_up(B, TB)

    x_p = jnp.pad(x, ((0, Bp - B), (0, 0), (0, Dp - D)))
    w_p = jnp.pad(weight, ((0, 0), (0, Dp - D), (0, Cp - C)))
    # W_flat[d, k*Cp + c] = W[k, d, c]
    w_flat = jnp.transpose(w_p, (1, 0, 2)).reshape(Dp, window_size * Cp)
    b_p = jnp.pad(bias, (0, Cp - C)).reshape(1, Cp)

    kernel = functools.partial(
        cnn_maxpool_kernel, window_size=window_size, num_win=num_win, c_pad=Cp)

    out = pl.pallas_call(
        kernel,
        out_shape=jax.ShapeDtypeStruct((Bp, Cp), jnp.float32),
        grid=(Bp // TB,),
        in_specs=[
            pl.BlockSpec((TB, S, Dp), lambda i: (i, 0, 0)),
            pl.BlockSpec((Dp, window_size * Cp), lambda i: (0, 0)),
            pl.BlockSpec((1, Cp), lambda i: (0, 0)),
        ],
        out_specs=pl.BlockSpec((TB, Cp), lambda i: (i, 0)),
        compiler_params=pltpu.CompilerParams(
            dimension_semantics=("parallel",)),
    )(x_p, w_flat, b_p)

    return out[:B, :C]


def reference(x, weight, bias, *, window_size):
    B, S, D = x.shape
    num_win = S - window_size + 1
    acc = jnp.zeros((B, num_win, weight.shape[-1]), jnp.float32)
    for k in range(window_size):
        acc = acc + jnp.einsum("bnd,dc->bnc", x[:, k:k + num_win, :], weight[k])
    return jnp.max(acc, axis=1) + bias[None, :]


if __name__ == "__main__":
    # Shapes matching the original module: x ~ (30, 5, 10),
    # Conv2d(1, 15, kernel=(3, 10)) -> output (30, 15).
    batch, seq_len, word_dim = 30, 5, 10
    out_channels, window_size = 15, 3

    key = jax.random.PRNGKey(0)
    kx, kw, kb = jax.random.split(key, 3)

    x = jax.random.normal(kx, (batch, seq_len, word_dim), dtype=jnp.float32)

    # Deterministic parameter init (PyTorch stores conv weight as
    # (out_channels, 1, window, word_dim); we keep it as (window, word_dim, C)).
    fan_in = 1 * window_size * word_dim
    bound = 1.0 / (fan_in ** 0.5)
    weight = jax.random.uniform(
        kw, (window_size, word_dim, out_channels),
        minval=-bound, maxval=bound, dtype=jnp.float32)
    bias = jax.random.uniform(
        kb, (out_channels,), minval=-bound, maxval=bound, dtype=jnp.float32)

    out = cnn_max_pooling(x, weight, bias, window_size=window_size)
    out = jax.block_until_ready(out)

    ref = reference(x, weight, bias, window_size=window_size)
    assert out.shape == (batch, out_channels)
    assert jnp.allclose(out, ref, atol=1e-5, rtol=1e-5)

    print("KERNEL_OK")
</pallas_src>

<mosaic_0001>
module attributes {stable_mosaic.version = 11 : i64} {
  func.func @cnn_maxpool_kernel(%arg0: i32, %arg1: memref<16x5x128xf32, #tpu.memory_space<vmem>>, %arg2: memref<128x384xf32, #tpu.memory_space<vmem>>, %arg3: memref<1x128xf32, #tpu.memory_space<vmem>>, %arg4: memref<16x128xf32, #tpu.memory_space<vmem>>) attributes {dimension_semantics = [#tpu.dimension_semantics<parallel>], iteration_bounds = array<i64: 2>, scalar_prefetch = 0 : i64, scratch_operands = 0 : i64, tpu.core_type = #tpu.core_type<tc>, window_params = [{transform_indices = @transform_0, window_bounds = array<i64: 16, 5, 128>}, {pipeline_mode = #tpu.pipeline_mode<synchronous>, transform_indices = @transform_1, window_bounds = array<i64: 128, 384>}, {pipeline_mode = #tpu.pipeline_mode<synchronous>, transform_indices = @transform_2, window_bounds = array<i64: 1, 128>}, {transform_indices = @transform_3, window_bounds = array<i64: 16, 128>}]} {
    %c0 = arith.constant 0 : index
    %c0_0 = arith.constant 0 : index
    %c0_1 = arith.constant 0 : index
    %0 = vector.load %arg1[%c0, %c0_0, %c0_1] : memref<16x5x128xf32, #tpu.memory_space<vmem>>, vector<16x5x128xf32>
    %c0_2 = arith.constant 0 : index
    %c0_3 = arith.constant 0 : index
    %1 = vector.load %arg2[%c0_2, %c0_3] : memref<128x384xf32, #tpu.memory_space<vmem>>, vector<128x384xf32>
    "tpu.trace_start"() <{level = 10 : i32, message = "bsd,dk->bsk"}> : () -> ()
    %cst = arith.constant dense<0.000000e+00> : vector<16x5x384xf32>
    %2 = tpu.matmul %0, %1, %cst {dimension_numbers = #tpu.dot_dimension_numbers<[2], [0], [0, 1], [1], [0, 0, 0, 1, 1, 1], [], []>} : vector<16x5x128xf32>, vector<128x384xf32>, vector<16x5x384xf32> -> vector<16x5x384xf32>
    "tpu.trace_stop"() : () -> ()
    %3 = vector.extract_strided_slice %2 {offsets = [0, 0, 0], sizes = [16, 3, 128], strides = [1, 1, 1]} : vector<16x5x384xf32> to vector<16x3x128xf32>
    %4 = vector.extract_strided_slice %2 {offsets = [0, 1, 128], sizes = [16, 3, 128], strides = [1, 1, 1]} : vector<16x5x384xf32> to vector<16x3x128xf32>
    %5 = arith.addf %3, %4 : vector<16x3x128xf32>
    %6 = vector.extract_strided_slice %2 {offsets = [0, 2, 256], sizes = [16, 3, 128], strides = [1, 1, 1]} : vector<16x5x384xf32> to vector<16x3x128xf32>
    %7 = arith.addf %5, %6 : vector<16x3x128xf32>
    %cst_4 = arith.constant dense<0xFF800000> : vector<16x128xf32>
    %8 = vector.multi_reduction <maximumf>, %7, %cst_4 [1] : vector<16x3x128xf32> to vector<16x128xf32>
    %c0_5 = arith.constant 0 : index
    %c0_6 = arith.constant 0 : index
    %9 = vector.load %arg3[%c0_5, %c0_6] : memref<1x128xf32, #tpu.memory_space<vmem>>, vector<1x128xf32>
    %10 = vector.broadcast %9 : vector<1x128xf32> to vector<16x128xf32>
    %11 = arith.addf %8, %10 : vector<16x128xf32>
    %c0_7 = arith.constant 0 : index
    %c0_8 = arith.constant 0 : index
    %12 = vector.load %arg4[%c0_7, %c0_8] : memref<16x128xf32, #tpu.memory_space<vmem>>, vector<16x128xf32>
    tpu.vector_store %arg4[%c0_7, %c0_8], %11 {strides = array<i32>} : memref<16x128xf32, #tpu.memory_space<vmem>>, vector<16x128xf32>,
    return
  }
  func.func @transform_0(%arg0: i32) -> (i32, i32, i32) {
    %c0_i32 = arith.constant 0 : i32
    %c0_i32_0 = arith.constant 0 : i32
    %c0_i32_1 = arith.constant 0 : i32
    return %arg0, %c0_i32, %c0_i32_0 : i32, i32, i32
  }
  func.func @transform_1(%arg0: i32) -> (i32, i32) {
    %c0_i32 = arith.constant 0 : i32
    %c0_i32_0 = arith.constant 0 : i32
    %c0_i32_1 = arith.constant 0 : i32
    return %c0_i32, %c0_i32_0 : i32, i32
  }
  func.func @transform_2(%arg0: i32) -> (i32, i32) {
    %c0_i32 = arith.constant 0 : i32
    %c0_i32_0 = arith.constant 0 : i32
    %c0_i32_1 = arith.constant 0 : i32
    return %c0_i32, %c0_i32_0 : i32, i32
  }
  func.func @transform_3(%arg0: i32) -> (i32, i32) {
    %c0_i32 = arith.constant 0 : i32
    %c0_i32_0 = arith.constant 0 : i32
    return %arg0, %c0_i32 : i32, i32
  }
}

</mosaic_0001>

<llo_original>
// kernel: tpu_custom_call.1
$region0: #{tpu_custom_call.1}
  #allocation0 [shape = 'u32[]', space=smem, size = 0x4, offset = 0x4, fixed_abs, tag = 'smem constant byte address 0x4 - core index']
  #allocation1 [shape = 'u32[144,128]{1,0:T(1,128)}', space=vmem, size = 0x12000, scoped, tag = 'internal scratch']
  %s0 = inlined_call_operand.vmem [shape: f32[32,5,128], index: 0, kind: input, shape index: {}]
  %s1 = inlined_call_operand.vmem [shape: f32[128,384], index: 1, kind: input, shape index: {}]
  %s2 = inlined_call_operand.vmem [shape: f32[1,128], index: 2, kind: input, shape index: {}]
  %s3 = inlined_call_operand.hbm [shape: f32[32,128], index: 3, kind: output, shape index: {}]
  %s4 = sld [smem:[#allocation0]]
  $region45: #{tpu_custom_call.1} parent=0
    _
  %s6 = ssub.s32 1, %s4
  %s7 = scalar_select 0, %s6, %s4
  $region1: #{tpu_custom_call.1} parent=0
    #allocation2 [shape = 'u8[16384]{0}', space=vmem, size = 0x4000, scoped, tag = 'output window, operand 0']
    #allocation3 [shape = 's32[2]{0}', space=sflag, size = 0x8, scoped, tag = 'scoped memory for tpu_custom_call.1']
    %8 = vsyncpa [#allocation3], 0
    %s9 = scalar_lea.sflag [#allocation3], 1
    %10 = vsyncpa %s9, 0
    loop: start=0, step=1, limit=4
    $region2: #{tpu_custom_call.1} parent=1 // loop_pre_header
      _
    $region3: #{tpu_custom_call.1} parent=1 // loop_header
      %s12 = sphi 0, %s16
      %p13 = scmp.ge.s32.totalorder %s12, 4
      %s22 = sphi 0, %s24
      %s25 = sphi 0, %s22
      %s26 = sphi 0, %s25
      %s42 = sphi 0, %s26
      %s46 = sphi 0, %s46
      %s48 = sphi 0, %s46
      %s49 = sphi 0, %s48
      %s63 = sphi 0, %s49
      %s67 = sphi 0, %s67
      %s69 = sphi 0, %s67
      %s70 = sphi 0, %s69
      %s84 = sphi 0, %s70
      %s90 = sphi 0, %s92
      %s93 = sphi 0, %s90
      %s94 = sphi 0, %s93
      %s110 = sphi 0, %s94
    $region4: #{tpu_custom_call.1} parent=1 // loop_header_branch
      %15 = sbr.rel (%p13) target = $region8
    $region5: #{tpu_custom_call.1} parent=1 // loop_body
      %s17 = ssub.s32 %s12, 1
      %s18 = ssub.s32 %s12, 2
      %s19 = sadd.s32 %s12, 1
      %s20 = ssub.s32 %s12, %s19
      %p21 = scmp.eq.s32.totalorder %s20, 0
      %s23 = sadd.s32 %s22, 1
      %s24 = scalar_select %p21, %s22, %s23
      %p27 = pneg %p21
      %p28 = scmp.eq.s32.totalorder %s12, 1
      %p29 = por %p27, %p28
      %p30 = scmp.ne.s32.totalorder %s22, %s25
      %p31 = scmp.eq.s32.totalorder %s12, 0
      %p32 = por %p30, %p31
      %p33 = scmp.ne.s32.totalorder %s22, %s25
      %p34 = scmp.eq.s32.totalorder %s17, 1
      %p35 = por %p33, %p34
      %p36 = scmp.ne.s32.totalorder %s25, %s26
      %p37 = scmp.eq.s32.totalorder %s17, 0
      %p38 = por %p36, %p37
      %p39 = scmp.ne.s32.totalorder %s25, %s26
      %p40 = scmp.eq.s32.totalorder %s18, 1
      %p41 = por %p39, %p40
      %p43 = scmp.ne.s32.totalorder %s26, %s42
      %p44 = scmp.eq.s32.totalorder %s18, 0
      %p45 = por %p43, %p44
      %s47 = sadd.s32 %s46, 1
      %p50 = scmp.eq.s32.totalorder %s12, 1
      %p51 = scmp.ne.s32.totalorder %s46, %s48
      %p52 = scmp.eq.s32.totalorder %s12, 0
      %p53 = por %p51, %p52
      %p54 = scmp.ne.s32.totalorder %s46, %s48
      %p55 = scmp.eq.s32.totalorder %s17, 1
      %p56 = por %p54, %p55
      %p57 = scmp.ne.s32.totalorder %s48, %s49
      %p58 = scmp.eq.s32.totalorder %s17, 0
      %p59 = por %p57, %p58
      %p60 = scmp.ne.s32.totalorder %s48, %s49
      %p61 = scmp.eq.s32.totalorder %s18, 1
      %p62 = por %p60, %p61
      %p64 = scmp.ne.s32.totalorder %s49, %s63
      %p65 = scmp.eq.s32.totalorder %s18, 0
      %p66 = por %p64, %p65
      %s68 = sadd.s32 %s67, 1
      %p71 = scmp.eq.s32.totalorder %s12, 1
      %p72 = scmp.ne.s32.totalorder %s67, %s69
      %p73 = scmp.eq.s32.totalorder %s12, 0
      %p74 = por %p72, %p73
      %p75 = scmp.ne.s32.totalorder %s67, %s69
      %p76 = scmp.eq.s32.totalorder %s17, 1
      %p77 = por %p75, %p76
      %p78 = scmp.ne.s32.totalorder %s69, %s70
      %p79 = scmp.eq.s32.totalorder %s17, 0
      %p80 = por %p78, %p79
      %p81 = scmp.ne.s32.totalorder %s69, %s70
      %p82 = scmp.eq.s32.totalorder %s18, 1
      %p83 = por %p81, %p82
      %p85 = scmp.ne.s32.totalorder %s70, %s84
      %p86 = scmp.eq.s32.totalorder %s18, 0
      %p87 = por %p85, %p86
      %s88 = ssub.s32 %s12, %s19
      %p89 = scmp.eq.s32.totalorder %s88, 0
      %s91 = sadd.s32 %s90, 1
      %s92 = scalar_select %p89, %s90, %s91
      %p95 = pneg %p89
      %p96 = scmp.eq.s32.totalorder %s12, 1
      %p97 = por %p95, %p96
      %p98 = scmp.ne.s32.totalorder %s90, %s93
      %p99 = scmp.eq.s32.totalorder %s12, 0
      %p100 = por %p98, %p99
      %p101 = scmp.ne.s32.totalorder %s90, %s93
      %p102 = scmp.eq.s32.totalorder %s17, 1
      %p103 = por %p101, %p102
      %p104 = scmp.ne.s32.totalorder %s93, %s94
      %p105 = scmp.eq.s32.totalorder %s17, 0
      %p106 = por %p104, %p105
      %p107 = scmp.ne.s32.totalorder %s93, %s94
      %p108 = scmp.eq.s32.totalorder %s18, 1
      %p109 = por %p107, %p108
      %p111 = scmp.ne.s32.totalorder %s94, %s110
      %p112 = scmp.eq.s32.totalorder %s18, 0
      %p113 = por %p111, %p112
      %p114 = scmp.le.s32.totalorder 1, %s12
      %p115 = scmp.lt.s32.totalorder %s12, 3
      %p116 = pnand %p114, %p115
      %p117 = pneg %p116
      // Predicated region
      $region9: #{tpu_custom_call.1} parent=5 // pred_check
        _
      $region10: #{tpu_custom_call.1} parent=5 // pred_check_branch
        %119 = sbr.rel (%p116) target = $region12
      $region11: #{tpu_custom_call.1} parent=5 // pred_region
        %s120 = ssub.s32 %s12, 1
        // Predicated region
        $region13: #{tpu_custom_call.1} parent=11 // pred_check
          %p121 = pneg %p59
        $region14: #{tpu_custom_call.1} parent=11 // pred_check_branch
          %123 = sbr.rel (%p121) target = $region16
        $region15: #{tpu_custom_call.1} parent=11 // pred_region
          _
        $region16: #{tpu_custom_call.1} parent=11 // pred_fallthru
          _
        // Predicated region
        $region17: #{tpu_custom_call.1} parent=11 // pred_check
          %p124 = pneg %p80
        $region18: #{tpu_custom_call.1} parent=11 // pred_check_branch
          %126 = sbr.rel (%p124) target = $region20
        $region19: #{tpu_custom_call.1} parent=11 // pred_region
          _
        $region20: #{tpu_custom_call.1} parent=11 // pred_fallthru
          _
      $region12: #{tpu_custom_call.1} parent=5 // pred_fallthru
        _
      %p127 = scmp.lt.s32.totalorder %s12, 2
      // Predicated region
      $region21: #{tpu_custom_call.1} parent=5 // pred_check
        %p128 = pneg %p127
      $region22: #{tpu_custom_call.1} parent=5 // pred_check_branch
        %130 = sbr.rel (%p128) target = $region24
      $region23: #{tpu_custom_call.1} parent=5 // pred_region
        // Predicated region
        $region25: #{tpu_custom_call.1} parent=23 // pred_check
          %p131 = pneg %p32
        $region26: #{tpu_custom_call.1} parent=23 // pred_check_branch
          %133 = sbr.rel (%p131) target = $region28
        $region27: #{tpu_custom_call.1} parent=23 // pred_region
          %s134 = smul.u32 16, %s12
          %p135 = scmp.lt.s32.totalorder %s134, 31
          %s136 = scalar_select %p135, %s134, 31
          %s137 = smul.addr %s136, 8
          %s138 = scalar_lea.vmem %s0, %s137
          %s139 = smul.u32 16, %s12
        $region28: #{tpu_custom_call.1} parent=23 // pred_fallthru
          _
      $region24: #{tpu_custom_call.1} parent=5 // pred_fallthru
        _
      %p140 = scmp.le.s32.totalorder 1, %s12
      %p141 = scmp.lt.s32.totalorder %s12, 3
      %p142 = pnand %p140, %p141
      %p143 = pneg %p142
      // Predicated region
      $region29: #{tpu_custom_call.1} parent=5 // pred_check
        _
      $region30: #{tpu_custom_call.1} parent=5 // pred_check_branch
        %145 = sbr.rel (%p142) target = $region32
      $region31: #{tpu_custom_call.1} parent=5 // pred_region
        %s146 = ssub.s32 %s12, 1
        %s147 = smul.u32 16, %s17
        %p148 = scmp.lt.s32.totalorder %s147, 31
        %s149 = scalar_select %p148, %s147, 31
        %s150 = smul.addr %s149, 8
        %s151 = scalar_lea.vmem %s0, %s150
        %p152 = pneg %p38
        %p153 = pneg %p35
        %p154 = pneg %p59
        %p155 = pneg %p56
        %p156 = pneg %p80
        %p157 = pneg %p77
        %p158 = pneg %p106
        %p159 = pneg %p103
        %s160 = sand.u32 %s93, 1
        %s161 = scalar_lea.sflag [#allocation3], %s160
        %s162 = sand.u32 %s93, 1
        %s163 = smul.addr %s162, 16
        %s164 = scalar_lea.vmem [#allocation2], %s163
        %s165 = smul.u32 16, %s17
        %p166 = scmp.lt.s32.totalorder %s165, 31
        %s167 = scalar_select %p166, %s165, 31
        %s168 = smul.addr %s167, 8
        %s169 = scalar_lea.vmem %s0, %s168
        %s170 = smul.u32 16, %s17
        %s171 = smul.u32 2, %s17
        %v172 = vld [vmem:[%s169] sm:$0x1f]
        %v173 = vld [vmem:[%s169 + $0x8] sm:$0x1f]
        %v174 = vld [vmem:[%s169 + $0x10] sm:$0x1f]
        %v175 = vld [vmem:[%s169 + $0x18] sm:$0x1f]
        %v176 = vld [vmem:[%s169 + $0x20] sm:$0x1f]
        %v177 = vld [vmem:[%s169 + $0x28] sm:$0x1f]
        %v178 = vld [vmem:[%s169 + $0x30] sm:$0x1f]
        %v179 = vld [vmem:[%s169 + $0x38] sm:$0x1f]
        %v180 = vld [vmem:[%s169 + $0x40] sm:$0x1f]
        %v181 = vld [vmem:[%s169 + $0x48] sm:$0x1f]
        %v182 = vld [vmem:[%s169 + $0x50] sm:$0x1f]
        %v183 = vld [vmem:[%s169 + $0x58] sm:$0x1f]
        %v184 = vld [vmem:[%s169 + $0x60] sm:$0x1f]
        %v185 = vld [vmem:[%s169 + $0x68] sm:$0x1f]
        %v186 = vld [vmem:[%s169 + $0x70] sm:$0x1f]
        %v187 = vld [vmem:[%s169 + $0x78] sm:$0x1f]
        %v188 = vld [vmem:[%s1] sm:$0xff]
        %v189 = vld [vmem:[%s1 + $0x8] sm:$0xff]
        %v190 = vld [vmem:[%s1 + $0x10] sm:$0xff]
        %v191 = vld [vmem:[%s1 + $0x18] sm:$0xff]
        %v192 = vld [vmem:[%s1 + $0x20] sm:$0xff]
        %v193 = vld [vmem:[%s1 + $0x28] sm:$0xff]
        %v194 = vld [vmem:[%s1 + $0x30] sm:$0xff]
        %v195 = vld [vmem:[%s1 + $0x38] sm:$0xff]
        %v196 = vld [vmem:[%s1 + $0x40] sm:$0xff]
        %v197 = vld [vmem:[%s1 + $0x48] sm:$0xff]
        %v198 = vld [vmem:[%s1 + $0x50] sm:$0xff]
        %v199 = vld [vmem:[%s1 + $0x58] sm:$0xff]
        %v200 = vld [vmem:[%s1 + $0x60] sm:$0xff]
        %v201 = vld [vmem:[%s1 + $0x68] sm:$0xff]
        %v202 = vld [vmem:[%s1 + $0x70] sm:$0xff]
        %v203 = vld [vmem:[%s1 + $0x78] sm:$0xff]
        %v204 = vld [vmem:[%s1 + $0x80] sm:$0xff]
        %v205 = vld [vmem:[%s1 + $0x88] sm:$0xff]
        %v206 = vld [vmem:[%s1 + $0x90] sm:$0xff]
        %v207 = vld [vmem:[%s1 + $0x98] sm:$0xff]
        %v208 = vld [vmem:[%s1 + $0xa0] sm:$0xff]
        %v209 = vld [vmem:[%s1 + $0xa8] sm:$0xff]
        %v210 = vld [vmem:[%s1 + $0xb0] sm:$0xff]
        %v211 = vld [vmem:[%s1 + $0xb8] sm:$0xff]
        %v212 = vld [vmem:[%s1 + $0xc0] sm:$0xff]
        %v213 = vld [vmem:[%s1 + $0xc8] sm:$0xff]
        %v214 = vld [vmem:[%s1 + $0xd0] sm:$0xff]
        %v215 = vld [vmem:[%s1 + $0xd8] sm:$0xff]
        %v216 = vld [vmem:[%s1 + $0xe0] sm:$0xff]
        %v217 = vld [vmem:[%s1 + $0xe8] sm:$0xff]
        %v218 = vld [vmem:[%s1 + $0xf0] sm:$0xff]
        %v219 = vld [vmem:[%s1 + $0xf8] sm:$0xff]
        %v220 = vld [vmem:[%s1 + $0x100] sm:$0xff]
        %v221 = vld [vmem:[%s1 + $0x108] sm:$0xff]
        %v222 = vld [vmem:[%s1 + $0x110] sm:$0xff]
        %v223 = vld [vmem:[%s1 + $0x118] sm:$0xff]
        %v224 = vld [vmem:[%s1 + $0x120] sm:$0xff]
        %v225 = vld [vmem:[%s1 + $0x128] sm:$0xff]
        %v226 = vld [vmem:[%s1 + $0x130] sm:$0xff]
        %v227 = vld [vmem:[%s1 + $0x138] sm:$0xff]
        %v228 = vld [vmem:[%s1 + $0x140] sm:$0xff]
        %v229 = vld [vmem:[%s1 + $0x148] sm:$0xff]
        %v230 = vld [vmem:[%s1 + $0x150] sm:$0xff]
        %v231 = vld [vmem:[%s1 + $0x158] sm:$0xff]
        %v232 = vld [vmem:[%s1 + $0x160] sm:$0xff]
        %v233 = vld [vmem:[%s1 + $0x168] sm:$0xff]
        %v234 = vld [vmem:[%s1 + $0x170] sm:$0xff]
        %v235 = vld [vmem:[%s1 + $0x178] sm:$0xff]
        %v252 = vcombine.high %v172, %v172
        %v254 = vunpack.c.l.s4 1966171168
        %v255 = vunpack.c.0.s8 %v254
        %v256 = vlaneseq
        %v257 = vshrl.u32 %v256, 7
        %v258 = vsub.s32 %v255, %v257
        %v259 = vrot.slane %v172, %v258
        %v261 = vunpack.c.l.s4 1966171168
        %v262 = vunpack.c.0.s8 %v261
        %v263 = vlaneseq
        %v264 = vshrl.u32 %v263, 7
        %v265 = vsub.s32 %v262, %v264
        %v266 = vrot.slane %v252, %v265
        %v267 = vcombine.high %v259, %v259
        %v269 = vunpack.c.l.s4 1966171168
        %v270 = vunpack.c.0.s8 %v269
        %v271 = vlaneseq
        %v272 = vshrl.u32 %v271, 7
        %v273 = vsub.s32 %v270, %v272
        %v274 = vrot.slane %v259, %v273
        %v276 = vunpack.c.l.s4 1966171168
        %v277 = vunpack.c.0.s8 %v276
        %v278 = vlaneseq
        %v279 = vshrl.u32 %v278, 7
        %v280 = vsub.s32 %v277, %v279
        %v281 = vrot.slane %v266, %v280
        %v283 = vunpack.c.l.s4 1966171168
        %v284 = vunpack.c.0.s8 %v283
        %v285 = vlaneseq
        %v286 = vshrl.u32 %v285, 7
        %v287 = vsub.s32 %v284, %v286
        %v288 = vrot.slane %v267, %v287
        %v289 = vcombine.high %v274, %v274
        %v290 = vcombine.high %v288, %v288
        %v291 = vcombine.high %v173, %v173
        %v293 = vunpack.c.l.s4 1966171168
        %v294 = vunpack.c.0.s8 %v293
        %v295 = vlaneseq
        %v296 = vshrl.u32 %v295, 7
        %v297 = vsub.s32 %v294, %v296
        %v298 = vrot.slane %v173, %v297
        %v300 = vunpack.c.l.s4 1966171168
        %v301 = vunpack.c.0.s8 %v300
        %v302 = vlaneseq
        %v303 = vshrl.u32 %v302, 7
        %v304 = vsub.s32 %v301, %v303
        %v305 = vrot.slane %v291, %v304
        %v306 = vcombine.high %v298, %v298
        %v308 = vunpack.c.l.s4 1966171168
        %v309 = vunpack.c.0.s8 %v308
        %v310 = vlaneseq
        %v311 = vshrl.u32 %v310, 7
        %v312 = vsub.s32 %v309, %v311
        %v313 = vrot.slane %v298, %v312
        %v315 = vunpack.c.l.s4 1966171168
        %v316 = vunpack.c.0.s8 %v315
        %v317 = vlaneseq
        %v318 = vshrl.u32 %v317, 7
        %v319 = vsub.s32 %v316, %v318
        %v320 = vrot.slane %v305, %v319
        %v322 = vunpack.c.l.s4 1966171168
        %v323 = vunpack.c.0.s8 %v322
        %v324 = vlaneseq
        %v325 = vshrl.u32 %v324, 7
        %v326 = vsub.s32 %v323, %v325
        %v327 = vrot.slane %v306, %v326
        %v328 = vcombine.high %v313, %v313
        %v329 = vcombine.high %v327, %v327
        %v330 = vcombine.high %v174, %v174
        %v332 = vunpack.c.l.s4 1966171168
        %v333 = vunpack.c.0.s8 %v332
        %v334 = vlaneseq
        %v335 = vshrl.u32 %v334, 7
        %v336 = vsub.s32 %v333, %v335
        %v337 = vrot.slane %v174, %v336
        %v339 = vunpack.c.l.s4 1966171168
        %v340 = vunpack.c.0.s8 %v339
        %v341 = vlaneseq
        %v342 = vshrl.u32 %v341, 7
        %v343 = vsub.s32 %v340, %v342
        %v344 = vrot.slane %v330, %v343
        %v345 = vcombine.high %v337, %v337
        %v347 = vunpack.c.l.s4 1966171168
        %v348 = vunpack.c.0.s8 %v347
        %v349 = vlaneseq
        %v350 = vshrl.u32 %v349, 7
        %v351 = vsub.s32 %v348, %v350
        %v352 = vrot.slane %v337, %v351
        %v354 = vunpack.c.l.s4 1966171168
        %v355 = vunpack.c.0.s8 %v354
        %v356 = vlaneseq
        %v357 = vshrl.u32 %v356, 7
        %v358 = vsub.s32 %v355, %v357
        %v359 = vrot.slane %v344, %v358
        %v361 = vunpack.c.l.s4 1966171168
        %v362 = vunpack.c.0.s8 %v361
        %v363 = vlaneseq
        %v364 = vshrl.u32 %v363, 7
        %v365 = vsub.s32 %v362, %v364
        %v366 = vrot.slane %v345, %v365
        %v367 = vcombine.high %v352, %v352
        %v368 = vcombine.high %v366, %v366
        %v369 = vcombine.high %v175, %v175
        %v371 = vunpack.c.l.s4 1966171168
        %v372 = vunpack.c.0.s8 %v371
        %v373 = vlaneseq
        %v374 = vshrl.u32 %v373, 7
        %v375 = vsub.s32 %v372, %v374
        %v376 = vrot.slane %v175, %v375
        %v378 = vunpack.c.l.s4 1966171168
        %v379 = vunpack.c.0.s8 %v378
        %v380 = vlaneseq
        %v381 = vshrl.u32 %v380, 7
        %v382 = vsub.s32 %v379, %v381
        %v383 = vrot.slane %v369, %v382
        %v384 = vcombine.high %v376, %v376
        %v386 = vunpack.c.l.s4 1966171168
        %v387 = vunpack.c.0.s8 %v386
        %v388 = vlaneseq
        %v389 = vshrl.u32 %v388, 7
        %v390 = vsub.s32 %v387, %v389
        %v391 = vrot.slane %v376, %v390
        %v393 = vunpack.c.l.s4 1966171168
        %v394 = vunpack.c.0.s8 %v393
        %v395 = vlaneseq
        %v396 = vshrl.u32 %v395, 7
        %v397 = vsub.s32 %v394, %v396
        %v398 = vrot.slane %v383, %v397
        %v400 = vunpack.c.l.s4 1966171168
        %v401 = vunpack.c.0.s8 %v400
        %v402 = vlaneseq
        %v403 = vshrl.u32 %v402, 7
        %v404 = vsub.s32 %v401, %v403
        %v405 = vrot.slane %v384, %v404
        %v406 = vcombine.high %v391, %v391
        %v407 = vcombine.high %v405, %v405
        %v408 = vcombine.high %v176, %v176
        %v410 = vunpack.c.l.s4 1966171168
        %v411 = vunpack.c.0.s8 %v410
        %v412 = vlaneseq
        %v413 = vshrl.u32 %v412, 7
        %v414 = vsub.s32 %v411, %v413
        %v415 = vrot.slane %v176, %v414
        %v417 = vunpack.c.l.s4 1966171168
        %v418 = vunpack.c.0.s8 %v417
        %v419 = vlaneseq
        %v420 = vshrl.u32 %v419, 7
        %v421 = vsub.s32 %v418, %v420
        %v422 = vrot.slane %v408, %v421
        %v423 = vcombine.high %v415, %v415
        %v425 = vunpack.c.l.s4 1966171168
        %v426 = vunpack.c.0.s8 %v425
        %v427 = vlaneseq
        %v428 = vshrl.u32 %v427, 7
        %v429 = vsub.s32 %v426, %v428
        %v430 = vrot.slane %v415, %v429
        %v432 = vunpack.c.l.s4 1966171168
        %v433 = vunpack.c.0.s8 %v432
        %v434 = vlaneseq
        %v435 = vshrl.u32 %v434, 7
        %v436 = vsub.s32 %v433, %v435
        %v437 = vrot.slane %v422, %v436
        %v439 = vunpack.c.l.s4 1966171168
        %v440 = vunpack.c.0.s8 %v439
        %v441 = vlaneseq
        %v442 = vshrl.u32 %v441, 7
        %v443 = vsub.s32 %v440, %v442
        %v444 = vrot.slane %v423, %v443
        %v445 = vcombine.high %v430, %v430
        %v446 = vcombine.high %v444, %v444
        %v447 = vcombine.high %v177, %v177
        %v449 = vunpack.c.l.s4 1966171168
        %v450 = vunpack.c.0.s8 %v449
        %v451 = vlaneseq
        %v452 = vshrl.u32 %v451, 7
        %v453 = vsub.s32 %v450, %v452
        %v454 = vrot.slane %v177, %v453
        %v456 = vunpack.c.l.s4 1966171168
        %v457 = vunpack.c.0.s8 %v456
        %v458 = vlaneseq
        %v459 = vshrl.u32 %v458, 7
        %v460 = vsub.s32 %v457, %v459
        %v461 = vrot.slane %v447, %v460
        %v462 = vcombine.high %v454, %v454
        %v464 = vunpack.c.l.s4 1966171168
        %v465 = vunpack.c.0.s8 %v464
        %v466 = vlaneseq
        %v467 = vshrl.u32 %v466, 7
        %v468 = vsub.s32 %v465, %v467
        %v469 = vrot.slane %v454, %v468
        %v471 = vunpack.c.l.s4 1966171168
        %v472 = vunpack.c.0.s8 %v471
        %v473 = vlaneseq
        %v474 = vshrl.u32 %v473, 7
        %v475 = vsub.s32 %v472, %v474
        %v476 = vrot.slane %v461, %v475
        %v478 = vunpack.c.l.s4 1966171168
        %v479 = vunpack.c.0.s8 %v478
        %v480 = vlaneseq
        %v481 = vshrl.u32 %v480, 7
        %v482 = vsub.s32 %v479, %v481
        %v483 = vrot.slane %v462, %v482
        %v484 = vcombine.high %v469, %v469
        %v485 = vcombine.high %v483, %v483
        %v486 = vcombine.high %v178, %v178
        %v488 = vunpack.c.l.s4 1966171168
        %v489 = vunpack.c.0.s8 %v488
        %v490 = vlaneseq
        %v491 = vshrl.u32 %v490, 7
        %v492 = vsub.s32 %v489, %v491
        %v493 = vrot.slane %v178, %v492
        %v495 = vunpack.c.l.s4 1966171168
        %v496 = vunpack.c.0.s8 %v495
        %v497 = vlaneseq
        %v498 = vshrl.u32 %v497, 7
        %v499 = vsub.s32 %v496, %v498
        %v500 = vrot.slane %v486, %v499
        %v501 = vcombine.high %v493, %v493
        %v503 = vunpack.c.l.s4 1966171168
        %v504 = vunpack.c.0.s8 %v503
        %v505 = vlaneseq
        %v506 = vshrl.u32 %v505, 7
        %v507 = vsub.s32 %v504, %v506
        %v508 = vrot.slane %v493, %v507
        %v510 = vunpack.c.l.s4 1966171168
        %v511 = vunpack.c.0.s8 %v510
        %v512 = vlaneseq
        %v513 = vshrl.u32 %v512, 7
        %v514 = vsub.s32 %v511, %v513
        %v515 = vrot.slane %v500, %v514
        %v517 = vunpack.c.l.s4 1966171168
        %v518 = vunpack.c.0.s8 %v517
        %v519 = vlaneseq
        %v520 = vshrl.u32 %v519, 7
        %v521 = vsub.s32 %v518, %v520
        %v522 = vrot.slane %v501, %v521
        %v523 = vcombine.high %v508, %v508
        %v524 = vcombine.high %v522, %v522
        %v525 = vcombine.high %v179, %v179
        %v527 = vunpack.c.l.s4 1966171168
        %v528 = vunpack.c.0.s8 %v527
        %v529 = vlaneseq
        %v530 = vshrl.u32 %v529, 7
        %v531 = vsub.s32 %v528, %v530
        %v532 = vrot.slane %v179, %v531
        %v534 = vunpack.c.l.s4 1966171168
        %v535 = vunpack.c.0.s8 %v534
        %v536 = vlaneseq
        %v537 = vshrl.u32 %v536, 7
        %v538 = vsub.s32 %v535, %v537
        %v539 = vrot.slane %v525, %v538
        %v540 = vcombine.high %v532, %v532
        %v542 = vunpack.c.l.s4 1966171168
        %v543 = vunpack.c.0.s8 %v542
        %v544 = vlaneseq
        %v545 = vshrl.u32 %v544, 7
        %v546 = vsub.s32 %v543, %v545
        %v547 = vrot.slane %v532, %v546
        %v549 = vunpack.c.l.s4 1966171168
        %v550 = vunpack.c.0.s8 %v549
        %v551 = vlaneseq
        %v552 = vshrl.u32 %v551, 7
        %v553 = vsub.s32 %v550, %v552
        %v554 = vrot.slane %v539, %v553
        %v556 = vunpack.c.l.s4 1966171168
        %v557 = vunpack.c.0.s8 %v556
        %v558 = vlaneseq
        %v559 = vshrl.u32 %v558, 7
        %v560 = vsub.s32 %v557, %v559
        %v561 = vrot.slane %v540, %v560
        %v562 = vcombine.high %v547, %v547
        %v563 = vcombine.high %v561, %v561
        %v564 = vcombine.high %v180, %v180
        %v566 = vunpack.c.l.s4 1966171168
        %v567 = vunpack.c.0.s8 %v566
        %v568 = vlaneseq
        %v569 = vshrl.u32 %v568, 7
        %v570 = vsub.s32 %v567, %v569
        %v571 = vrot.slane %v180, %v570
        %v573 = vunpack.c.l.s4 1966171168
        %v574 = vunpack.c.0.s8 %v573
        %v575 = vlaneseq
        %v576 = vshrl.u32 %v575, 7
        %v577 = vsub.s32 %v574, %v576
        %v578 = vrot.slane %v564, %v577
        %v579 = vcombine.high %v571, %v571
        %v581 = vunpack.c.l.s4 1966171168
        %v582 = vunpack.c.0.s8 %v581
        %v583 = vlaneseq
        %v584 = vshrl.u32 %v583, 7
        %v585 = vsub.s32 %v582, %v584
        %v586 = vrot.slane %v571, %v585
        %v588 = vunpack.c.l.s4 1966171168
        %v589 = vunpack.c.0.s8 %v588
        %v590 = vlaneseq
        %v591 = vshrl.u32 %v590, 7
        %v592 = vsub.s32 %v589, %v591
        %v593 = vrot.slane %v578, %v592
        %v595 = vunpack.c.l.s4 1966171168
        %v596 = vunpack.c.0.s8 %v595
        %v597 = vlaneseq
        %v598 = vshrl.u32 %v597, 7
        %v599 = vsub.s32 %v596, %v598
        %v600 = vrot.slane %v579, %v599
        %v601 = vcombine.high %v586, %v586
        %v602 = vcombine.high %v600, %v600
        %v603 = vcombine.high %v181, %v181
        %v605 = vunpack.c.l.s4 1966171168
        %v606 = vunpack.c.0.s8 %v605
        %v607 = vlaneseq
        %v608 = vshrl.u32 %v607, 7
        %v609 = vsub.s32 %v606, %v608
        %v610 = vrot.slane %v181, %v609
        %v612 = vunpack.c.l.s4 1966171168
        %v613 = vunpack.c.0.s8 %v612
        %v614 = vlaneseq
        %v615 = vshrl.u32 %v614, 7
        %v616 = vsub.s32 %v613, %v615
        %v617 = vrot.slane %v603, %v616
        %v618 = vcombine.high %v610, %v610
        %v620 = vunpack.c.l.s4 1966171168
        %v621 = vunpack.c.0.s8 %v620
        %v622 = vlaneseq
        %v623 = vshrl.u32 %v622, 7
        %v624 = vsub.s32 %v621, %v623
        %v625 = vrot.slane %v610, %v624
        %v627 = vunpack.c.l.s4 1966171168
        %v628 = vunpack.c.0.s8 %v627
        %v629 = vlaneseq
        %v630 = vshrl.u32 %v629, 7
        %v631 = vsub.s32 %v628, %v630
        %v632 = vrot.slane %v617, %v631
        %v634 = vunpack.c.l.s4 1966171168
        %v635 = vunpack.c.0.s8 %v634
        %v636 = vlaneseq
        %v637 = vshrl.u32 %v636, 7
        %v638 = vsub.s32 %v635, %v637
        %v639 = vrot.slane %v618, %v638
        %v640 = vcombine.high %v625, %v625
        %v641 = vcombine.high %v639, %v639
        %v642 = vcombine.high %v182, %v182
        %v644 = vunpack.c.l.s4 1966171168
        %v645 = vunpack.c.0.s8 %v644
        %v646 = vlaneseq
        %v647 = vshrl.u32 %v646, 7
        %v648 = vsub.s32 %v645, %v647
        %v649 = vrot.slane %v182, %v648
        %v651 = vunpack.c.l.s4 1966171168
        %v652 = vunpack.c.0.s8 %v651
        %v653 = vlaneseq
        %v654 = vshrl.u32 %v653, 7
        %v655 = vsub.s32 %v652, %v654
        %v656 = vrot.slane %v642, %v655
        %v657 = vcombine.high %v649, %v649
        %v659 = vunpack.c.l.s4 1966171168
        %v660 = vunpack.c.0.s8 %v659
        %v661 = vlaneseq
        %v662 = vshrl.u32 %v661, 7
        %v663 = vsub.s32 %v660, %v662
        %v664 = vrot.slane %v649, %v663
        %v666 = vunpack.c.l.s4 1966171168
        %v667 = vunpack.c.0.s8 %v666
        %v668 = vlaneseq
        %v669 = vshrl.u32 %v668, 7
        %v670 = vsub.s32 %v667, %v669
        %v671 = vrot.slane %v656, %v670
        %v673 = vunpack.c.l.s4 1966171168
        %v674 = vunpack.c.0.s8 %v673
        %v675 = vlaneseq
        %v676 = vshrl.u32 %v675, 7
        %v677 = vsub.s32 %v674, %v676
        %v678 = vrot.slane %v657, %v677
        %v679 = vcombine.high %v664, %v664
        %v680 = vcombine.high %v678, %v678
        %v681 = vcombine.high %v183, %v183
        %v683 = vunpack.c.l.s4 1966171168
        %v684 = vunpack.c.0.s8 %v683
        %v685 = vlaneseq
        %v686 = vshrl.u32 %v685, 7
        %v687 = vsub.s32 %v684, %v686
        %v688 = vrot.slane %v183, %v687
        %v690 = vunpack.c.l.s4 1966171168
        %v691 = vunpack.c.0.s8 %v690
        %v692 = vlaneseq
        %v693 = vshrl.u32 %v692, 7
        %v694 = vsub.s32 %v691, %v693
        %v695 = vrot.slane %v681, %v694
        %v696 = vcombine.high %v688, %v688
        %v698 = vunpack.c.l.s4 1966171168
        %v699 = vunpack.c.0.s8 %v698
        %v700 = vlaneseq
        %v701 = vshrl.u32 %v700, 7
        %v702 = vsub.s32 %v699, %v701
        %v703 = vrot.slane %v688, %v702
        %v705 = vunpack.c.l.s4 1966171168
        %v706 = vunpack.c.0.s8 %v705
        %v707 = vlaneseq
        %v708 = vshrl.u32 %v707, 7
        %v709 = vsub.s32 %v706, %v708
        %v710 = vrot.slane %v695, %v709
        %v712 = vunpack.c.l.s4 1966171168
        %v713 = vunpack.c.0.s8 %v712
        %v714 = vlaneseq
        %v715 = vshrl.u32 %v714, 7
        %v716 = vsub.s32 %v713, %v715
        %v717 = vrot.slane %v696, %v716
        %v718 = vcombine.high %v703, %v703
        %v719 = vcombine.high %v717, %v717
        %v720 = vcombine.high %v184, %v184
        %v722 = vunpack.c.l.s4 1966171168
        %v723 = vunpack.c.0.s8 %v722
        %v724 = vlaneseq
        %v725 = vshrl.u32 %v724, 7
        %v726 = vsub.s32 %v723, %v725
        %v727 = vrot.slane %v184, %v726
        %v729 = vunpack.c.l.s4 1966171168
        %v730 = vunpack.c.0.s8 %v729
        %v731 = vlaneseq
        %v732 = vshrl.u32 %v731, 7
        %v733 = vsub.s32 %v730, %v732
        %v734 = vrot.slane %v720, %v733
        %v735 = vcombine.high %v727, %v727
        %v737 = vunpack.c.l.s4 1966171168
        %v738 = vunpack.c.0.s8 %v737
        %v739 = vlaneseq
        %v740 = vshrl.u32 %v739, 7
        %v741 = vsub.s32 %v738, %v740
        %v742 = vrot.slane %v727, %v741
        %v744 = vunpack.c.l.s4 1966171168
        %v745 = vunpack.c.0.s8 %v744
        %v746 = vlaneseq
        %v747 = vshrl.u32 %v746, 7
        %v748 = vsub.s32 %v745, %v747
        %v749 = vrot.slane %v734, %v748
        %v751 = vunpack.c.l.s4 1966171168
        %v752 = vunpack.c.0.s8 %v751
        %v753 = vlaneseq
        %v754 = vshrl.u32 %v753, 7
        %v755 = vsub.s32 %v752, %v754
        %v756 = vrot.slane %v735, %v755
        %v757 = vcombine.high %v742, %v742
        %v758 = vcombine.high %v756, %v756
        %v759 = vcombine.high %v185, %v185
        %v761 = vunpack.c.l.s4 1966171168
        %v762 = vunpack.c.0.s8 %v761
        %v763 = vlaneseq
        %v764 = vshrl.u32 %v763, 7
        %v765 = vsub.s32 %v762, %v764
        %v766 = vrot.slane %v185, %v765
        %v768 = vunpack.c.l.s4 1966171168
        %v769 = vunpack.c.0.s8 %v768
        %v770 = vlaneseq
        %v771 = vshrl.u32 %v770, 7
        %v772 = vsub.s32 %v769, %v771
        %v773 = vrot.slane %v759, %v772
        %v774 = vcombine.high %v766, %v766
        %v776 = vunpack.c.l.s4 1966171168
        %v777 = vunpack.c.0.s8 %v776
        %v778 = vlaneseq
        %v779 = vshrl.u32 %v778, 7
        %v780 = vsub.s32 %v777, %v779
        %v781 = vrot.slane %v766, %v780
        %v783 = vunpack.c.l.s4 1966171168
        %v784 = vunpack.c.0.s8 %v783
        %v785 = vlaneseq
        %v786 = vshrl.u32 %v785, 7
        %v787 = vsub.s32 %v784, %v786
        %v788 = vrot.slane %v773, %v787
        %v790 = vunpack.c.l.s4 1966171168
        %v791 = vunpack.c.0.s8 %v790
        %v792 = vlaneseq
        %v793 = vshrl.u32 %v792, 7
        %v794 = vsub.s32 %v791, %v793
        %v795 = vrot.slane %v774, %v794
        %v796 = vcombine.high %v781, %v781
        %v797 = vcombine.high %v795, %v795
        %v798 = vcombine.high %v186, %v186
        %v800 = vunpack.c.l.s4 1966171168
        %v801 = vunpack.c.0.s8 %v800
        %v802 = vlaneseq
        %v803 = vshrl.u32 %v802, 7
        %v804 = vsub.s32 %v801, %v803
        %v805 = vrot.slane %v186, %v804
        %v807 = vunpack.c.l.s4 1966171168
        %v808 = vunpack.c.0.s8 %v807
        %v809 = vlaneseq
        %v810 = vshrl.u32 %v809, 7
        %v811 = vsub.s32 %v808, %v810
        %v812 = vrot.slane %v798, %v811
        %v813 = vcombine.high %v805, %v805
        %v815 = vunpack.c.l.s4 1966171168
        %v816 = vunpack.c.0.s8 %v815
        %v817 = vlaneseq
        %v818 = vshrl.u32 %v817, 7
        %v819 = vsub.s32 %v816, %v818
        %v820 = vrot.slane %v805, %v819
        %v822 = vunpack.c.l.s4 1966171168
        %v823 = vunpack.c.0.s8 %v822
        %v824 = vlaneseq
        %v825 = vshrl.u32 %v824, 7
        %v826 = vsub.s32 %v823, %v825
        %v827 = vrot.slane %v812, %v826
        %v829 = vunpack.c.l.s4 1966171168
        %v830 = vunpack.c.0.s8 %v829
        %v831 = vlaneseq
        %v832 = vshrl.u32 %v831, 7
        %v833 = vsub.s32 %v830, %v832
        %v834 = vrot.slane %v813, %v833
        %v835 = vcombine.high %v820, %v820
        %v836 = vcombine.high %v834, %v834
        %v837 = vcombine.high %v187, %v187
        %v839 = vunpack.c.l.s4 1966171168
        %v840 = vunpack.c.0.s8 %v839
        %v841 = vlaneseq
        %v842 = vshrl.u32 %v841, 7
        %v843 = vsub.s32 %v840, %v842
        %v844 = vrot.slane %v187, %v843
        %v846 = vunpack.c.l.s4 1966171168
        %v847 = vunpack.c.0.s8 %v846
        %v848 = vlaneseq
        %v849 = vshrl.u32 %v848, 7
        %v850 = vsub.s32 %v847, %v849
        %v851 = vrot.slane %v837, %v850
        %v852 = vcombine.high %v844, %v844
        %v854 = vunpack.c.l.s4 1966171168
        %v855 = vunpack.c.0.s8 %v854
        %v856 = vlaneseq
        %v857 = vshrl.u32 %v856, 7
        %v858 = vsub.s32 %v855, %v857
        %v859 = vrot.slane %v844, %v858
        %v861 = vunpack.c.l.s4 1966171168
        %v862 = vunpack.c.0.s8 %v861
        %v863 = vlaneseq
        %v864 = vshrl.u32 %v863, 7
        %v865 = vsub.s32 %v862, %v864
        %v866 = vrot.slane %v851, %v865
        %v868 = vunpack.c.l.s4 1966171168
        %v869 = vunpack.c.0.s8 %v868
        %v870 = vlaneseq
        %v871 = vshrl.u32 %v870, 7
        %v872 = vsub.s32 %v869, %v871
        %v873 = vrot.slane %v852, %v872
        %v874 = vcombine.high %v859, %v859
        %v875 = vcombine.high %v873, %v873
        %v876 = vcombine.low %v274, %v288
        %v877 = vcombine.low %v289, %v290
        %v878 = vcombine.low %v281, %v313
        %v879 = vcombine.low %v327, %v328
        %v881 = vunpack.c.l.s4 1966171168
        %v882 = vunpack.c.0.s8 %v881
        %v883 = vlaneseq
        %v884 = vshrl.u32 %v883, 7
        %v885 = vsub.s32 %v882, %v884
        %v886 = vrot.slane %v876, %v885
        %v888 = vunpack.c.l.s4 1966171168
        %v889 = vunpack.c.0.s8 %v888
        %v890 = vlaneseq
        %v891 = vshrl.u32 %v890, 7
        %v892 = vsub.s32 %v889, %v891
        %v893 = vrot.slane %v877, %v892
        %v895 = vunpack.c.l.s4 1966171168
        %v896 = vunpack.c.0.s8 %v895
        %v897 = vlaneseq
        %v898 = vshrl.u32 %v897, 7
        %v899 = vsub.s32 %v896, %v898
        %v900 = vrot.slane %v878, %v899
        %v902 = vunpack.c.l.s4 1966171168
        %v903 = vunpack.c.0.s8 %v902
        %v904 = vlaneseq
        %v905 = vshrl.u32 %v904, 7
        %v906 = vsub.s32 %v903, %v905
        %v907 = vrot.slane %v879, %v906
        %v908 = vcombine.low %v886, %v893
        %v909 = vcombine.low %v900, %v907
        %v911 = vunpack.c.l.s4 1966171168
        %v912 = vunpack.c.0.s8 %v911
        %v913 = vlaneseq
        %v914 = vshrl.u32 %v913, 7
        %v915 = vsub.s32 %v912, %v914
        %v916 = vrot.slane %v908, %v915
        %v918 = vunpack.c.l.s4 1966171168
        %v919 = vunpack.c.0.s8 %v918
        %v920 = vlaneseq
        %v921 = vshrl.u32 %v920, 7
        %v922 = vsub.s32 %v919, %v921
        %v923 = vrot.slane %v909, %v922
        %v924 = vcombine.low %v916, %v923
        %v925 = vcombine.low %v329, %v320
        %v926 = vcombine.low %v352, %v366
        %v927 = vcombine.low %v367, %v368
        %v928 = vcombine.low %v359, %v391
        %v930 = vunpack.c.l.s4 1966171168
        %v931 = vunpack.c.0.s8 %v930
        %v932 = vlaneseq
        %v933 = vshrl.u32 %v932, 7
        %v934 = vsub.s32 %v931, %v933
        %v935 = vrot.slane %v925, %v934
        %v937 = vunpack.c.l.s4 1966171168
        %v938 = vunpack.c.0.s8 %v937
        %v939 = vlaneseq
        %v940 = vshrl.u32 %v939, 7
        %v941 = vsub.s32 %v938, %v940
        %v942 = vrot.slane %v926, %v941
        %v944 = vunpack.c.l.s4 1966171168
        %v945 = vunpack.c.0.s8 %v944
        %v946 = vlaneseq
        %v947 = vshrl.u32 %v946, 7
        %v948 = vsub.s32 %v945, %v947
        %v949 = vrot.slane %v927, %v948
        %v951 = vunpack.c.l.s4 1966171168
        %v952 = vunpack.c.0.s8 %v951
        %v953 = vlaneseq
        %v954 = vshrl.u32 %v953, 7
        %v955 = vsub.s32 %v952, %v954
        %v956 = vrot.slane %v928, %v955
        %v957 = vcombine.low %v935, %v942
        %v958 = vcombine.low %v949, %v956
        %v960 = vunpack.c.l.s4 1966171168
        %v961 = vunpack.c.0.s8 %v960
        %v962 = vlaneseq
        %v963 = vshrl.u32 %v962, 7
        %v964 = vsub.s32 %v961, %v963
        %v965 = vrot.slane %v957, %v964
        %v967 = vunpack.c.l.s4 1966171168
        %v968 = vunpack.c.0.s8 %v967
        %v969 = vlaneseq
        %v970 = vshrl.u32 %v969, 7
        %v971 = vsub.s32 %v968, %v970
        %v972 = vrot.slane %v958, %v971
        %v973 = vcombine.low %v965, %v972
        %v974 = vcombine.low %v405, %v406
        %v975 = vcombine.low %v407, %v398
        %v976 = vcombine.low %v430, %v444
        %v977 = vcombine.low %v445, %v446
        %v979 = vunpack.c.l.s4 1966171168
        %v980 = vunpack.c.0.s8 %v979
        %v981 = vlaneseq
        %v982 = vshrl.u32 %v981, 7
        %v983 = vsub.s32 %v980, %v982
        %v984 = vrot.slane %v974, %v983
        %v986 = vunpack.c.l.s4 1966171168
        %v987 = vunpack.c.0.s8 %v986
        %v988 = vlaneseq
        %v989 = vshrl.u32 %v988, 7
        %v990 = vsub.s32 %v987, %v989
        %v991 = vrot.slane %v975, %v990
        %v993 = vunpack.c.l.s4 1966171168
        %v994 = vunpack.c.0.s8 %v993
        %v995 = vlaneseq
        %v996 = vshrl.u32 %v995, 7
        %v997 = vsub.s32 %v994, %v996
        %v998 = vrot.slane %v976, %v997
        %v1000 = vunpack.c.l.s4 1966171168
        %v1001 = vunpack.c.0.s8 %v1000
        %v1002 = vlaneseq
        %v1003 = vshrl.u32 %v1002, 7
        %v1004 = vsub.s32 %v1001, %v1003
        %v1005 = vrot.slane %v977, %v1004
        %v1006 = vcombine.low %v984, %v991
        %v1007 = vcombine.low %v998, %v1005
        %v1009 = vunpack.c.l.s4 1966171168
        %v1010 = vunpack.c.0.s8 %v1009
        %v1011 = vlaneseq
        %v1012 = vshrl.u32 %v1011, 7
        %v1013 = vsub.s32 %v1010, %v1012
        %v1014 = vrot.slane %v1006, %v1013
        %v1016 = vunpack.c.l.s4 1966171168
        %v1017 = vunpack.c.0.s8 %v1016
        %v1018 = vlaneseq
        %v1019 = vshrl.u32 %v1018, 7
        %v1020 = vsub.s32 %v1017, %v1019
        %v1021 = vrot.slane %v1007, %v1020
        %v1022 = vcombine.low %v1014, %v1021
        %v1023 = vcombine.low %v437, %v469
        %v1024 = vcombine.low %v483, %v484
        %v1025 = vcombine.low %v485, %v476
        %v1026 = vcombine.low %v508, %v522
        %v1028 = vunpack.c.l.s4 1966171168
        %v1029 = vunpack.c.0.s8 %v1028
        %v1030 = vlaneseq
        %v1031 = vshrl.u32 %v1030, 7
        %v1032 = vsub.s32 %v1029, %v1031
        %v1033 = vrot.slane %v1023, %v1032
        %v1035 = vunpack.c.l.s4 1966171168
        %v1036 = vunpack.c.0.s8 %v1035
        %v1037 = vlaneseq
        %v1038 = vshrl.u32 %v1037, 7
        %v1039 = vsub.s32 %v1036, %v1038
        %v1040 = vrot.slane %v1024, %v1039
        %v1042 = vunpack.c.l.s4 1966171168
        %v1043 = vunpack.c.0.s8 %v1042
        %v1044 = vlaneseq
        %v1045 = vshrl.u32 %v1044, 7
        %v1046 = vsub.s32 %v1043, %v1045
        %v1047 = vrot.slane %v1025, %v1046
        %v1049 = vunpack.c.l.s4 1966171168
        %v1050 = vunpack.c.0.s8 %v1049
        %v1051 = vlaneseq
        %v1052 = vshrl.u32 %v1051, 7
        %v1053 = vsub.s32 %v1050, %v1052
        %v1054 = vrot.slane %v1026, %v1053
        %v1055 = vcombine.low %v1033, %v1040
        %v1056 = vcombine.low %v1047, %v1054
        %v1058 = vunpack.c.l.s4 1966171168
        %v1059 = vunpack.c.0.s8 %v1058
        %v1060 = vlaneseq
        %v1061 = vshrl.u32 %v1060, 7
        %v1062 = vsub.s32 %v1059, %v1061
        %v1063 = vrot.slane %v1055, %v1062
        %v1065 = vunpack.c.l.s4 1966171168
        %v1066 = vunpack.c.0.s8 %v1065
        %v1067 = vlaneseq
        %v1068 = vshrl.u32 %v1067, 7
        %v1069 = vsub.s32 %v1066, %v1068
        %v1070 = vrot.slane %v1056, %v1069
        %v1071 = vcombine.low %v1063, %v1070
        %v1072 = vcombine.low %v523, %v524
        %v1073 = vcombine.low %v515, %v547
        %v1074 = vcombine.low %v561, %v562
        %v1075 = vcombine.low %v563, %v554
        %v1077 = vunpack.c.l.s4 1966171168
        %v1078 = vunpack.c.0.s8 %v1077
        %v1079 = vlaneseq
        %v1080 = vshrl.u32 %v1079, 7
        %v1081 = vsub.s32 %v1078, %v1080
        %v1082 = vrot.slane %v1072, %v1081
        %v1084 = vunpack.c.l.s4 1966171168
        %v1085 = vunpack.c.0.s8 %v1084
        %v1086 = vlaneseq
        %v1087 = vshrl.u32 %v1086, 7
        %v1088 = vsub.s32 %v1085, %v1087
        %v1089 = vrot.slane %v1073, %v1088
        %v1091 = vunpack.c.l.s4 1966171168
        %v1092 = vunpack.c.0.s8 %v1091
        %v1093 = vlaneseq
        %v1094 = vshrl.u32 %v1093, 7
        %v1095 = vsub.s32 %v1092, %v1094
        %v1096 = vrot.slane %v1074, %v1095
        %v1098 = vunpack.c.l.s4 1966171168
        %v1099 = vunpack.c.0.s8 %v1098
        %v1100 = vlaneseq
        %v1101 = vshrl.u32 %v1100, 7
        %v1102 = vsub.s32 %v1099, %v1101
        %v1103 = vrot.slane %v1075, %v1102
        %v1104 = vcombine.low %v1082, %v1089
        %v1105 = vcombine.low %v1096, %v1103
        %v1107 = vunpack.c.l.s4 1966171168
        %v1108 = vunpack.c.0.s8 %v1107
        %v1109 = vlaneseq
        %v1110 = vshrl.u32 %v1109, 7
        %v1111 = vsub.s32 %v1108, %v1110
        %v1112 = vrot.slane %v1104, %v1111
        %v1114 = vunpack.c.l.s4 1966171168
        %v1115 = vunpack.c.0.s8 %v1114
        %v1116 = vlaneseq
        %v1117 = vshrl.u32 %v1116, 7
        %v1118 = vsub.s32 %v1115, %v1117
        %v1119 = vrot.slane %v1105, %v1118
        %v1120 = vcombine.low %v1112, %v1119
        %v1121 = vcombine.low %v586, %v600
        %v1122 = vcombine.low %v601, %v602
        %v1123 = vcombine.low %v593, %v625
        %v1124 = vcombine.low %v639, %v640
        %v1126 = vunpack.c.l.s4 1966171168
        %v1127 = vunpack.c.0.s8 %v1126
        %v1128 = vlaneseq
        %v1129 = vshrl.u32 %v1128, 7
        %v1130 = vsub.s32 %v1127, %v1129
        %v1131 = vrot.slane %v1121, %v1130
        %v1133 = vunpack.c.l.s4 1966171168
        %v1134 = vunpack.c.0.s8 %v1133
        %v1135 = vlaneseq
        %v1136 = vshrl.u32 %v1135, 7
        %v1137 = vsub.s32 %v1134, %v1136
        %v1138 = vrot.slane %v1122, %v1137
        %v1140 = vunpack.c.l.s4 1966171168
        %v1141 = vunpack.c.0.s8 %v1140
        %v1142 = vlaneseq
        %v1143 = vshrl.u32 %v1142, 7
        %v1144 = vsub.s32 %v1141, %v1143
        %v1145 = vrot.slane %v1123, %v1144
        %v1147 = vunpack.c.l.s4 1966171168
        %v1148 = vunpack.c.0.s8 %v1147
        %v1149 = vlaneseq
        %v1150 = vshrl.u32 %v1149, 7
        %v1151 = vsub.s32 %v1148, %v1150
        %v1152 = vrot.slane %v1124, %v1151
        %v1153 = vcombine.low %v1131, %v1138
        %v1154 = vcombine.low %v1145, %v1152
        %v1156 = vunpack.c.l.s4 1966171168
        %v1157 = vunpack.c.0.s8 %v1156
        %v1158 = vlaneseq
        %v1159 = vshrl.u32 %v1158, 7
        %v1160 = vsub.s32 %v1157, %v1159
        %v1161 = vrot.slane %v1153, %v1160
        %v1163 = vunpack.c.l.s4 1966171168
        %v1164 = vunpack.c.0.s8 %v1163
        %v1165 = vlaneseq
        %v1166 = vshrl.u32 %v1165, 7
        %v1167 = vsub.s32 %v1164, %v1166
        %v1168 = vrot.slane %v1154, %v1167
        %v1169 = vcombine.low %v1161, %v1168
        %v1170 = vcombine.low %v641, %v632
        %v1171 = vcombine.low %v664, %v678
        %v1172 = vcombine.low %v679, %v680
        %v1173 = vcombine.low %v671, %v703
        %v1175 = vunpack.c.l.s4 1966171168
        %v1176 = vunpack.c.0.s8 %v1175
        %v1177 = vlaneseq
        %v1178 = vshrl.u32 %v1177, 7
        %v1179 = vsub.s32 %v1176, %v1178
        %v1180 = vrot.slane %v1170, %v1179
        %v1182 = vunpack.c.l.s4 1966171168
        %v1183 = vunpack.c.0.s8 %v1182
        %v1184 = vlaneseq
        %v1185 = vshrl.u32 %v1184, 7
        %v1186 = vsub.s32 %v1183, %v1185
        %v1187 = vrot.slane %v1171, %v1186
        %v1189 = vunpack.c.l.s4 1966171168
        %v1190 = vunpack.c.0.s8 %v1189
        %v1191 = vlaneseq
        %v1192 = vshrl.u32 %v1191, 7
        %v1193 = vsub.s32 %v1190, %v1192
        %v1194 = vrot.slane %v1172, %v1193
        %v1196 = vunpack.c.l.s4 1966171168
        %v1197 = vunpack.c.0.s8 %v1196
        %v1198 = vlaneseq
        %v1199 = vshrl.u32 %v1198, 7
        %v1200 = vsub.s32 %v1197, %v1199
        %v1201 = vrot.slane %v1173, %v1200
        %v1202 = vcombine.low %v1180, %v1187
        %v1203 = vcombine.low %v1194, %v1201
        %v1205 = vunpack.c.l.s4 1966171168
        %v1206 = vunpack.c.0.s8 %v1205
        %v1207 = vlaneseq
        %v1208 = vshrl.u32 %v1207, 7
        %v1209 = vsub.s32 %v1206, %v1208
        %v1210 = vrot.slane %v1202, %v1209
        %v1212 = vunpack.c.l.s4 1966171168
        %v1213 = vunpack.c.0.s8 %v1212
        %v1214 = vlaneseq
        %v1215 = vshrl.u32 %v1214, 7
        %v1216 = vsub.s32 %v1213, %v1215
        %v1217 = vrot.slane %v1203, %v1216
        %v1218 = vcombine.low %v1210, %v1217
        %v1219 = vcombine.low %v717, %v718
        %v1220 = vcombine.low %v719, %v710
        %v1221 = vcombine.low %v742, %v756
        %v1222 = vcombine.low %v757, %v758
        %v1224 = vunpack.c.l.s4 1966171168
        %v1225 = vunpack.c.0.s8 %v1224
        %v1226 = vlaneseq
        %v1227 = vshrl.u32 %v1226, 7
        %v1228 = vsub.s32 %v1225, %v1227
        %v1229 = vrot.slane %v1219, %v1228
        %v1231 = vunpack.c.l.s4 1966171168
        %v1232 = vunpack.c.0.s8 %v1231
        %v1233 = vlaneseq
        %v1234 = vshrl.u32 %v1233, 7
        %v1235 = vsub.s32 %v1232, %v1234
        %v1236 = vrot.slane %v1220, %v1235
        %v1238 = vunpack.c.l.s4 1966171168
        %v1239 = vunpack.c.0.s8 %v1238
        %v1240 = vlaneseq
        %v1241 = vshrl.u32 %v1240, 7
        %v1242 = vsub.s32 %v1239, %v1241
        %v1243 = vrot.slane %v1221, %v1242
        %v1245 = vunpack.c.l.s4 1966171168
        %v1246 = vunpack.c.0.s8 %v1245
        %v1247 = vlaneseq
        %v1248 = vshrl.u32 %v1247, 7
        %v1249 = vsub.s32 %v1246, %v1248
        %v1250 = vrot.slane %v1222, %v1249
        %v1251 = vcombine.low %v1229, %v1236
        %v1252 = vcombine.low %v1243, %v1250
        %v1254 = vunpack.c.l.s4 1966171168
        %v1255 = vunpack.c.0.s8 %v1254
        %v1256 = vlaneseq
        %v1257 = vshrl.u32 %v1256, 7
        %v1258 = vsub.s32 %v1255, %v1257
        %v1259 = vrot.slane %v1251, %v1258
        %v1261 = vunpack.c.l.s4 1966171168
        %v1262 = vunpack.c.0.s8 %v1261
        %v1263 = vlaneseq
        %v1264 = vshrl.u32 %v1263, 7
        %v1265 = vsub.s32 %v1262, %v1264
        %v1266 = vrot.slane %v1252, %v1265
        %v1267 = vcombine.low %v1259, %v1266
        %v1268 = vcombine.low %v749, %v781
        %v1269 = vcombine.low %v795, %v796
        %v1270 = vcombine.low %v797, %v788
        %v1271 = vcombine.low %v820, %v834
        %v1273 = vunpack.c.l.s4 1966171168
        %v1274 = vunpack.c.0.s8 %v1273
        %v1275 = vlaneseq
        %v1276 = vshrl.u32 %v1275, 7
        %v1277 = vsub.s32 %v1274, %v1276
        %v1278 = vrot.slane %v1268, %v1277
        %v1280 = vunpack.c.l.s4 1966171168
        %v1281 = vunpack.c.0.s8 %v1280
        %v1282 = vlaneseq
        %v1283 = vshrl.u32 %v1282, 7
        %v1284 = vsub.s32 %v1281, %v1283
        %v1285 = vrot.slane %v1269, %v1284
        %v1287 = vunpack.c.l.s4 1966171168
        %v1288 = vunpack.c.0.s8 %v1287
        %v1289 = vlaneseq
        %v1290 = vshrl.u32 %v1289, 7
        %v1291 = vsub.s32 %v1288, %v1290
        %v1292 = vrot.slane %v1270, %v1291
        %v1294 = vunpack.c.l.s4 1966171168
        %v1295 = vunpack.c.0.s8 %v1294
        %v1296 = vlaneseq
        %v1297 = vshrl.u32 %v1296, 7
        %v1298 = vsub.s32 %v1295, %v1297
        %v1299 = vrot.slane %v1271, %v1298
        %v1300 = vcombine.low %v1278, %v1285
        %v1301 = vcombine.low %v1292, %v1299
        %v1303 = vunpack.c.l.s4 1966171168
        %v1304 = vunpack.c.0.s8 %v1303
        %v1305 = vlaneseq
        %v1306 = vshrl.u32 %v1305, 7
        %v1307 = vsub.s32 %v1304, %v1306
        %v1308 = vrot.slane %v1300, %v1307
        %v1310 = vunpack.c.l.s4 1966171168
        %v1311 = vunpack.c.0.s8 %v1310
        %v1312 = vlaneseq
        %v1313 = vshrl.u32 %v1312, 7
        %v1314 = vsub.s32 %v1311, %v1313
        %v1315 = vrot.slane %v1301, %v1314
        %v1316 = vcombine.low %v1308, %v1315
        %v1317 = vcombine.low %v835, %v836
        %v1318 = vcombine.low %v827, %v859
        %v1319 = vcombine.low %v873, %v874
        %v1320 = vcombine.low %v875, %v866
        %v1322 = vunpack.c.l.s4 1966171168
        %v1323 = vunpack.c.0.s8 %v1322
        %v1324 = vlaneseq
        %v1325 = vshrl.u32 %v1324, 7
        %v1326 = vsub.s32 %v1323, %v1325
        %v1327 = vrot.slane %v1317, %v1326
        %v1329 = vunpack.c.l.s4 1966171168
        %v1330 = vunpack.c.0.s8 %v1329
        %v1331 = vlaneseq
        %v1332 = vshrl.u32 %v1331, 7
        %v1333 = vsub.s32 %v1330, %v1332
        %v1334 = vrot.slane %v1318, %v1333
        %v1336 = vunpack.c.l.s4 1966171168
        %v1337 = vunpack.c.0.s8 %v1336
        %v1338 = vlaneseq
        %v1339 = vshrl.u32 %v1338, 7
        %v1340 = vsub.s32 %v1337, %v1339
        %v1341 = vrot.slane %v1319, %v1340
        %v1343 = vunpack.c.l.s4 1966171168
        %v1344 = vunpack.c.0.s8 %v1343
        %v1345 = vlaneseq
        %v1346 = vshrl.u32 %v1345, 7
        %v1347 = vsub.s32 %v1344, %v1346
        %v1348 = vrot.slane %v1320, %v1347
        %v1349 = vcombine.low %v1327, %v1334
        %v1350 = vcombine.low %v1341, %v1348
        %v1352 = vunpack.c.l.s4 1966171168
        %v1353 = vunpack.c.0.s8 %v1352
        %v1354 = vlaneseq
        %v1355 = vshrl.u32 %v1354, 7
        %v1356 = vsub.s32 %v1353, %v1355
        %v1357 = vrot.slane %v1349, %v1356
        %v1359 = vunpack.c.l.s4 1966171168
        %v1360 = vunpack.c.0.s8 %v1359
        %v1361 = vlaneseq
        %v1362 = vshrl.u32 %v1361, 7
        %v1363 = vsub.s32 %v1360, %v1362
        %v1364 = vrot.slane %v1350, %v1363
        %v1365 = vcombine.low %v1357, %v1364
        %1376 = vmatprep.subr.mxu0 %v189
        %1377 = vmatpush1.msra.mxu0 %v188
        %1378 = vmatprep.subr.mxu0 %v192
        %1379 = vmatpush1.msra.mxu0 %v191
        %1380 = vmatprep.subr.mxu0 %v195
        %1381 = vmatpush1.msra.mxu0 %v194
        %1382 = vmatprep.subr.mxu0 %v198
        %1383 = vmatpush1.msra.mxu0 %v197
        %1384 = vmatprep.subr.mxu0 %v201
        %1385 = vmatpush1.msra.mxu0 %v200
        %1386 = vmatprep.subr.mxu0 %v204
        %1387 = vmatpush1.msra.mxu0 %v203
        %1388 = vmatprep.subr.mxu0 %v207
        %1389 = vmatpush1.msra.mxu0 %v206
        %1390 = vmatprep.subr.mxu0 %v210
        %1391 = vmatpush1.msra.mxu0 %v209
        %1392 = vmatprep.subr.mxu0 %v213
        %1393 = vmatpush1.msra.mxu0 %v212
        %1394 = vmatprep.subr.mxu0 %v216
        %1395 = vmatpush1.msra.mxu0 %v215
        %1396 = vmatprep.subr.mxu0 %v219
        %1397 = vmatpush1.msra.mxu0 %v218
        %1398 = vmatprep.subr.mxu0 %v222
        %1399 = vmatpush1.msra.mxu0 %v221
        %1400 = vmatprep.subr.mxu0 %v225
        %1401 = vmatpush1.msra.mxu0 %v224
        %1402 = vmatprep.subr.mxu0 %v228
        %1403 = vmatpush1.msra.mxu0 %v227
        %1404 = vmatprep.subr.mxu0 %v231
        %1405 = vmatpush1.msra.mxu0 %v230
        %1406 = vmatprep.subr.mxu0 %v234
        %1407 = vmatpush1.msra.mxu0 %v233
        %1408 = vmatprep.subr.mxu0 0.0
        %1409 = vmatpush1.msra.mxu0 0.0
        %1410 = vmatprep.subr.mxu0 0.0
        %1411 = vmatpush1.msra.mxu0 0.0
        %1412 = vmatprep.subr.mxu0 0.0
        %1413 = vmatpush1.msra.mxu0 0.0
        %1414 = vmatprep.subr.mxu0 0.0
        %1415 = vmatpush1.msra.mxu0 0.0
        %1416 = vmatprep.subr.mxu0 0.0
        %1417 = vmatpush1.msra.mxu0 0.0
        %1418 = vmatprep.subr.mxu0 0.0
        %1419 = vmatpush1.msra.mxu0 0.0
        %1420 = vmatprep.subr.mxu0 0.0
        %1421 = vmatpush1.msra.mxu0 0.0
        %1422 = vmatprep.subr.mxu0 0.0
        %1423 = vmatpush1.msra.mxu0 0.0
        %1424 = vmatprep.subr.mxu0 0.0
        %1425 = vmatpush1.msra.mxu0 0.0
        %1426 = vmatprep.subr.mxu0 0.0
        %1427 = vmatpush1.msra.mxu0 0.0
        %1428 = vmatprep.subr.mxu0 0.0
        %1429 = vmatpush1.msra.mxu0 0.0
        %1430 = vmatprep.subr.mxu0 0.0
        %1431 = vmatpush1.msra.mxu0 0.0
        %1432 = vmatprep.subr.mxu0 0.0
        %1433 = vmatpush1.msra.mxu0 0.0
        %1434 = vmatprep.subr.mxu0 0.0
        %1435 = vmatpush1.msra.mxu0 0.0
        %1436 = vmatprep.subr.mxu0 0.0
        %1437 = vmatpush1.msra.mxu0 0.0
        %1438 = vmatprep.subr.mxu0 0.0
        %1439 = vmatpush1.msra.mxu0 0.0
        %1440 = vmatprep.mubr.f32.mxu0 0.0
        %1441 = vmatmul.mubr.f32.gmra.mrb[0].mxu0 %v924
        %v1442 = vpop.f32.mrb[0].mxu0
        %v1443 = vadd.f32 0.0, %v1442
        %v1444 = vpop.f32.mrb[0].mxu0
        %v1445 = vadd.f32 0.0, %v1444
        %1446 = vmatprep.mubr.f32.mxu0 0.0
        %1447 = vmatmul.mubr.f32.gmra.mrb[0].mxu0 %v973
        %v1448 = vpop.f32.mrb[0].mxu0
        %v1449 = vadd.f32 0.0, %v1448
        %v1450 = vpop.f32.mrb[0].mxu0
        %v1451 = vadd.f32 0.0, %v1450
        %1452 = vmatprep.mubr.f32.mxu0 0.0
        %1453 = vmatmul.mubr.f32.gmra.mrb[0].mxu0 %v1022
        %v1454 = vpop.f32.mrb[0].mxu0
        %v1455 = vadd.f32 0.0, %v1454
        %v1456 = vpop.f32.mrb[0].mxu0
        %v1457 = vadd.f32 0.0, %v1456
        %1458 = vmatprep.mubr.f32.mxu0 0.0
        %1459 = vmatmul.mubr.f32.gmra.mrb[0].mxu0 %v1071
        %v1460 = vpop.f32.mrb[0].mxu0
        %v1461 = vadd.f32 0.0, %v1460
        %v1462 = vpop.f32.mrb[0].mxu0
        %v1463 = vadd.f32 0.0, %v1462
        %1464 = vmatprep.mubr.f32.mxu0 0.0
        %1465 = vmatmul.mubr.f32.gmra.mrb[0].mxu0 %v1120
        %v1466 = vpop.f32.mrb[0].mxu0
        %v1467 = vadd.f32 0.0, %v1466
        %v1468 = vpop.f32.mrb[0].mxu0
        %v1469 = vadd.f32 0.0, %v1468
        %1470 = vmatprep.mubr.f32.mxu0 0.0
        %1471 = vmatmul.mubr.f32.gmra.mrb[0].mxu0 %v1169
        %v1472 = vpop.f32.mrb[0].mxu0
        %v1473 = vadd.f32 0.0, %v1472
        %v1474 = vpop.f32.mrb[0].mxu0
        %v1475 = vadd.f32 0.0, %v1474
        %1476 = vmatprep.mubr.f32.mxu0 0.0
        %1477 = vmatmul.mubr.f32.gmra.mrb[0].mxu0 %v1218
        %v1478 = vpop.f32.mrb[0].mxu0
        %v1479 = vadd.f32 0.0, %v1478
        %v1480 = vpop.f32.mrb[0].mxu0
        %v1481 = vadd.f32 0.0, %v1480
        %1482 = vmatprep.mubr.f32.mxu0 0.0
        %1483 = vmatmul.mubr.f32.gmra.mrb[0].mxu0 %v1267
        %v1484 = vpop.f32.mrb[0].mxu0
        %v1485 = vadd.f32 0.0, %v1484
        %v1486 = vpop.f32.mrb[0].mxu0
        %v1487 = vadd.f32 0.0, %v1486
        %1488 = vmatprep.mubr.f32.mxu0 0.0
        %1489 = vmatmul.mubr.f32.gmra.mrb[0].mxu0 %v1316
        %v1490 = vpop.f32.mrb[0].mxu0
        %v1491 = vadd.f32 0.0, %v1490
        %v1492 = vpop.f32.mrb[0].mxu0
        %v1493 = vadd.f32 0.0, %v1492
        %1494 = vmatprep.mubr.f32.mxu0 0.0
        %1495 = vmatmul.mubr.f32.gmra.mrb[0].mxu0 %v1365
        %v1496 = vpop.f32.mrb[0].mxu0
        %v1497 = vadd.f32 0.0, %v1496
        %v1498 = vpop.f32.mrb[0].mxu0
        %v1499 = vadd.f32 0.0, %v1498
        %1500 = vdwg.mxu0
        %1501 = vmatprep.subr.mxu0 0.0
        %1502 = vmatpush1.msra.mxu0 %v190
        %1503 = vmatprep.subr.mxu0 0.0
        %1504 = vmatpush1.msra.mxu0 %v193
        %1505 = vmatprep.subr.mxu0 0.0
        %1506 = vmatpush1.msra.mxu0 %v196
        %1507 = vmatprep.subr.mxu0 0.0
        %1508 = vmatpush1.msra.mxu0 %v199
        %1509 = vmatprep.subr.mxu0 0.0
        %1510 = vmatpush1.msra.mxu0 %v202
        %1511 = vmatprep.subr.mxu0 0.0
        %1512 = vmatpush1.msra.mxu0 %v205
        %1513 = vmatprep.subr.mxu0 0.0
        %1514 = vmatpush1.msra.mxu0 %v208
        %1515 = vmatprep.subr.mxu0 0.0
        %1516 = vmatpush1.msra.mxu0 %v211
        %1517 = vmatprep.subr.mxu0 0.0
        %1518 = vmatpush1.msra.mxu0 %v214
        %1519 = vmatprep.subr.mxu0 0.0
        %1520 = vmatpush1.msra.mxu0 %v217
        %1521 = vmatprep.subr.mxu0 0.0
        %1522 = vmatpush1.msra.mxu0 %v220
        %1523 = vmatprep.subr.mxu0 0.0
        %1524 = vmatpush1.msra.mxu0 %v223
        %1525 = vmatprep.subr.mxu0 0.0
        %1526 = vmatpush1.msra.mxu0 %v226
        %1527 = vmatprep.subr.mxu0 0.0
        %1528 = vmatpush1.msra.mxu0 %v229
        %1529 = vmatprep.subr.mxu0 0.0
        %1530 = vmatpush1.msra.mxu0 %v232
        %1531 = vmatprep.subr.mxu0 0.0
        %1532 = vmatpush1.msra.mxu0 %v235
        %1533 = vmatprep.subr.mxu0 0.0
        %1534 = vmatpush1.msra.mxu0 0.0
        %1535 = vmatprep.subr.mxu0 0.0
        %1536 = vmatpush1.msra.mxu0 0.0
        %1537 = vmatprep.subr.mxu0 0.0
        %1538 = vmatpush1.msra.mxu0 0.0
        %1539 = vmatprep.subr.mxu0 0.0
        %1540 = vmatpush1.msra.mxu0 0.0
        %1541 = vmatprep.subr.mxu0 0.0
        %1542 = vmatpush1.msra.mxu0 0.0
        %1543 = vmatprep.subr.mxu0 0.0
        %1544 = vmatpush1.msra.mxu0 0.0
        %1545 = vmatprep.subr.mxu0 0.0
        %1546 = vmatpush1.msra.mxu0 0.0
        %1547 = vmatprep.subr.mxu0 0.0
        %1548 = vmatpush1.msra.mxu0 0.0
        %1549 = vmatprep.subr.mxu0 0.0
        %1550 = vmatpush1.msra.mxu0 0.0
        %1551 = vmatprep.subr.mxu0 0.0
        %1552 = vmatpush1.msra.mxu0 0.0
        %1553 = vmatprep.subr.mxu0 0.0
        %1554 = vmatpush1.msra.mxu0 0.0
        %1555 = vmatprep.subr.mxu0 0.0
        %1556 = vmatpush1.msra.mxu0 0.0
        %1557 = vmatprep.subr.mxu0 0.0
        %1558 = vmatpush1.msra.mxu0 0.0
        %1559 = vmatprep.subr.mxu0 0.0
        %1560 = vmatpush1.msra.mxu0 0.0
        %1561 = vmatprep.subr.mxu0 0.0
        %1562 = vmatpush1.msra.mxu0 0.0
        %1563 = vmatprep.subr.mxu0 0.0
        %1564 = vmatpush1.msra.mxu0 0.0
        %1565 = vmatprep.mubr.f32.mxu0 0.0
        %1566 = vmatmul.mubr.f32.gmra.mrb[0].mxu0 %v924
        %v1567 = vpop.f32.mrb[0].mxu0
        %v1568 = vadd.f32 0.0, %v1567
        %v1569 = vpop.f32.mrb[0].mxu0
        %1570 = vmatprep.mubr.f32.mxu0 0.0
        %1571 = vmatmul.mubr.f32.gmra.mrb[0].mxu0 %v973
        %v1572 = vpop.f32.mrb[0].mxu0
        %v1573 = vadd.f32 0.0, %v1572
        %v1574 = vpop.f32.mrb[0].mxu0
        %1575 = vmatprep.mubr.f32.mxu0 0.0
        %1576 = vmatmul.mubr.f32.gmra.mrb[0].mxu0 %v1022
        %v1577 = vpop.f32.mrb[0].mxu0
        %v1578 = vadd.f32 0.0, %v1577
        %v1579 = vpop.f32.mrb[0].mxu0
        %1580 = vmatprep.mubr.f32.mxu0 0.0
        %1581 = vmatmul.mubr.f32.gmra.mrb[0].mxu0 %v1071
        %v1582 = vpop.f32.mrb[0].mxu0
        %v1583 = vadd.f32 0.0, %v1582
        %v1584 = vpop.f32.mrb[0].mxu0
        %1585 = vmatprep.mubr.f32.mxu0 0.0
        %1586 = vmatmul.mubr.f32.gmra.mrb[0].mxu0 %v1120
        %v1587 = vpop.f32.mrb[0].mxu0
        %v1588 = vadd.f32 0.0, %v1587
        %v1589 = vpop.f32.mrb[0].mxu0
        %1590 = vmatprep.mubr.f32.mxu0 0.0
        %1591 = vmatmul.mubr.f32.gmra.mrb[0].mxu0 %v1169
        %v1592 = vpop.f32.mrb[0].mxu0
        %v1593 = vadd.f32 0.0, %v1592
        %v1594 = vpop.f32.mrb[0].mxu0
        %1595 = vmatprep.mubr.f32.mxu0 0.0
        %1596 = vmatmul.mubr.f32.gmra.mrb[0].mxu0 %v1218
        %v1597 = vpop.f32.mrb[0].mxu0
        %v1598 = vadd.f32 0.0, %v1597
        %v1599 = vpop.f32.mrb[0].mxu0
        %1600 = vmatprep.mubr.f32.mxu0 0.0
        %1601 = vmatmul.mubr.f32.gmra.mrb[0].mxu0 %v1267
        %v1602 = vpop.f32.mrb[0].mxu0
        %v1603 = vadd.f32 0.0, %v1602
        %v1604 = vpop.f32.mrb[0].mxu0
        %1605 = vmatprep.mubr.f32.mxu0 0.0
        %1606 = vmatmul.mubr.f32.gmra.mrb[0].mxu0 %v1316
        %v1607 = vpop.f32.mrb[0].mxu0
        %v1608 = vadd.f32 0.0, %v1607
        %v1609 = vpop.f32.mrb[0].mxu0
        %1610 = vmatprep.mubr.f32.mxu0 0.0
        %1611 = vmatmul.mubr.f32.gmra.mrb[0].mxu0 %v1365
        %v1612 = vpop.f32.mrb[0].mxu0
        %v1613 = vadd.f32 0.0, %v1612
        %v1614 = vpop.f32.mrb[0].mxu0
        %1615 = vdwg.mxu0
        %v1646 = vcombine.low %v1443, %v1445
        %v1647 = vcombine.high %v1443, %v1445
        %v1648 = vcombine.high %v1568, %v1568
        %v1650 = vunpack.c.l.s4 1966171168
        %v1651 = vunpack.c.0.s8 %v1650
        %v1652 = vlaneseq
        %v1653 = vshrl.u32 %v1652, 7
        %v1654 = vsub.s32 %v1651, %v1653
        %v1655 = vrot.slane %v1646, %v1654
        %v1657 = vunpack.c.l.s4 1966171168
        %v1658 = vunpack.c.0.s8 %v1657
        %v1659 = vlaneseq
        %v1660 = vshrl.u32 %v1659, 7
        %v1661 = vsub.s32 %v1658, %v1660
        %v1662 = vrot.slane %v1647, %v1661
        %v1664 = vunpack.c.l.s4 1966171168
        %v1665 = vunpack.c.0.s8 %v1664
        %v1666 = vlaneseq
        %v1667 = vshrl.u32 %v1666, 7
        %v1668 = vsub.s32 %v1665, %v1667
        %v1669 = vrot.slane %v1568, %v1668
        %v1671 = vunpack.c.l.s4 1966171168
        %v1672 = vunpack.c.0.s8 %v1671
        %v1673 = vlaneseq
        %v1674 = vshrl.u32 %v1673, 7
        %v1675 = vsub.s32 %v1672, %v1674
        %v1676 = vrot.slane %v1648, %v1675
        %v1677 = vcombine.low %v1655, %v1669
        %v1678 = vcombine.high %v1655, %v1669
        %v1679 = vcombine.low %v1662, %v1676
        %v1680 = vcombine.high %v1662, %v1676
        %v1682 = vunpack.c.l.s4 1966171168
        %v1683 = vunpack.c.0.s8 %v1682
        %v1684 = vlaneseq
        %v1685 = vshrl.u32 %v1684, 7
        %v1686 = vsub.s32 %v1683, %v1685
        %v1687 = vrot.slane %v1677, %v1686
        %v1689 = vunpack.c.l.s4 1966171168
        %v1690 = vunpack.c.0.s8 %v1689
        %v1691 = vlaneseq
        %v1692 = vshrl.u32 %v1691, 7
        %v1693 = vsub.s32 %v1690, %v1692
        %v1694 = vrot.slane %v1679, %v1693
        %v1696 = vunpack.c.l.s4 1966171168
        %v1697 = vunpack.c.0.s8 %v1696
        %v1698 = vlaneseq
        %v1699 = vshrl.u32 %v1698, 7
        %v1700 = vsub.s32 %v1697, %v1699
        %v1701 = vrot.slane %v1678, %v1700
        %v1703 = vunpack.c.l.s4 1966171168
        %v1704 = vunpack.c.0.s8 %v1703
        %v1705 = vlaneseq
        %v1706 = vshrl.u32 %v1705, 7
        %v1707 = vsub.s32 %v1704, %v1706
        %v1708 = vrot.slane %v1680, %v1707
        %v1709 = vcombine.high %v1687, %v1687
        %v1710 = vcombine.high %v1694, %v1694
        %v1711 = vcombine.high %v1701, %v1701
        %v1712 = vcombine.high %v1708, %v1708
        %v1713 = vcombine.low %v1449, %v1451
        %v1714 = vcombine.high %v1449, %v1451
        %v1715 = vcombine.high %v1573, %v1573
        %v1717 = vunpack.c.l.s4 1966171168
        %v1718 = vunpack.c.0.s8 %v1717
        %v1719 = vlaneseq
        %v1720 = vshrl.u32 %v1719, 7
        %v1721 = vsub.s32 %v1718, %v1720
        %v1722 = vrot.slane %v1713, %v1721
        %v1724 = vunpack.c.l.s4 1966171168
        %v1725 = vunpack.c.0.s8 %v1724
        %v1726 = vlaneseq
        %v1727 = vshrl.u32 %v1726, 7
        %v1728 = vsub.s32 %v1725, %v1727
        %v1729 = vrot.slane %v1714, %v1728
        %v1731 = vunpack.c.l.s4 1966171168
        %v1732 = vunpack.c.0.s8 %v1731
        %v1733 = vlaneseq
        %v1734 = vshrl.u32 %v1733, 7
        %v1735 = vsub.s32 %v1732, %v1734
        %v1736 = vrot.slane %v1573, %v1735
        %v1738 = vunpack.c.l.s4 1966171168
        %v1739 = vunpack.c.0.s8 %v1738
        %v1740 = vlaneseq
        %v1741 = vshrl.u32 %v1740, 7
        %v1742 = vsub.s32 %v1739, %v1741
        %v1743 = vrot.slane %v1715, %v1742
        %v1744 = vcombine.low %v1722, %v1736
        %v1745 = vcombine.high %v1722, %v1736
        %v1746 = vcombine.low %v1729, %v1743
        %v1747 = vcombine.high %v1729, %v1743
        %v1749 = vunpack.c.l.s4 1966171168
        %v1750 = vunpack.c.0.s8 %v1749
        %v1751 = vlaneseq
        %v1752 = vshrl.u32 %v1751, 7
        %v1753 = vsub.s32 %v1750, %v1752
        %v1754 = vrot.slane %v1744, %v1753
        %v1756 = vunpack.c.l.s4 1966171168
        %v1757 = vunpack.c.0.s8 %v1756
        %v1758 = vlaneseq
        %v1759 = vshrl.u32 %v1758, 7
        %v1760 = vsub.s32 %v1757, %v1759
        %v1761 = vrot.slane %v1746, %v1760
        %v1763 = vunpack.c.l.s4 1966171168
        %v1764 = vunpack.c.0.s8 %v1763
        %v1765 = vlaneseq
        %v1766 = vshrl.u32 %v1765, 7
        %v1767 = vsub.s32 %v1764, %v1766
        %v1768 = vrot.slane %v1745, %v1767
        %v1770 = vunpack.c.l.s4 1966171168
        %v1771 = vunpack.c.0.s8 %v1770
        %v1772 = vlaneseq
        %v1773 = vshrl.u32 %v1772, 7
        %v1774 = vsub.s32 %v1771, %v1773
        %v1775 = vrot.slane %v1747, %v1774
        %v1776 = vcombine.high %v1754, %v1754
        %v1777 = vcombine.high %v1761, %v1761
        %v1778 = vcombine.high %v1768, %v1768
        %v1779 = vcombine.high %v1775, %v1775
        %v1780 = vcombine.low %v1455, %v1457
        %v1781 = vcombine.high %v1455, %v1457
        %v1782 = vcombine.high %v1578, %v1578
        %v1784 = vunpack.c.l.s4 1966171168
        %v1785 = vunpack.c.0.s8 %v1784
        %v1786 = vlaneseq
        %v1787 = vshrl.u32 %v1786, 7
        %v1788 = vsub.s32 %v1785, %v1787
        %v1789 = vrot.slane %v1780, %v1788
        %v1791 = vunpack.c.l.s4 1966171168
        %v1792 = vunpack.c.0.s8 %v1791
        %v1793 = vlaneseq
        %v1794 = vshrl.u32 %v1793, 7
        %v1795 = vsub.s32 %v1792, %v1794
        %v1796 = vrot.slane %v1781, %v1795
        %v1798 = vunpack.c.l.s4 1966171168
        %v1799 = vunpack.c.0.s8 %v1798
        %v1800 = vlaneseq
        %v1801 = vshrl.u32 %v1800, 7
        %v1802 = vsub.s32 %v1799, %v1801
        %v1803 = vrot.slane %v1578, %v1802
        %v1805 = vunpack.c.l.s4 1966171168
        %v1806 = vunpack.c.0.s8 %v1805
        %v1807 = vlaneseq
        %v1808 = vshrl.u32 %v1807, 7
        %v1809 = vsub.s32 %v1806, %v1808
        %v1810 = vrot.slane %v1782, %v1809
        %v1811 = vcombine.low %v1789, %v1803
        %v1812 = vcombine.high %v1789, %v1803
        %v1813 = vcombine.low %v1796, %v1810
        %v1814 = vcombine.high %v1796, %v1810
        %v1816 = vunpack.c.l.s4 1966171168
        %v1817 = vunpack.c.0.s8 %v1816
        %v1818 = vlaneseq
        %v1819 = vshrl.u32 %v1818, 7
        %v1820 = vsub.s32 %v1817, %v1819
        %v1821 = vrot.slane %v1811, %v1820
        %v1823 = vunpack.c.l.s4 1966171168
        %v1824 = vunpack.c.0.s8 %v1823
        %v1825 = vlaneseq
        %v1826 = vshrl.u32 %v1825, 7
        %v1827 = vsub.s32 %v1824, %v1826
        %v1828 = vrot.slane %v1813, %v1827
        %v1830 = vunpack.c.l.s4 1966171168
        %v1831 = vunpack.c.0.s8 %v1830
        %v1832 = vlaneseq
        %v1833 = vshrl.u32 %v1832, 7
        %v1834 = vsub.s32 %v1831, %v1833
        %v1835 = vrot.slane %v1812, %v1834
        %v1837 = vunpack.c.l.s4 1966171168
        %v1838 = vunpack.c.0.s8 %v1837
        %v1839 = vlaneseq
        %v1840 = vshrl.u32 %v1839, 7
        %v1841 = vsub.s32 %v1838, %v1840
        %v1842 = vrot.slane %v1814, %v1841
        %v1843 = vcombine.high %v1821, %v1821
        %v1844 = vcombine.high %v1828, %v1828
        %v1845 = vcombine.high %v1835, %v1835
        %v1846 = vcombine.high %v1842, %v1842
        %v1847 = vcombine.low %v1461, %v1463
        %v1848 = vcombine.high %v1461, %v1463
        %v1849 = vcombine.high %v1583, %v1583
        %v1851 = vunpack.c.l.s4 1966171168
        %v1852 = vunpack.c.0.s8 %v1851
        %v1853 = vlaneseq
        %v1854 = vshrl.u32 %v1853, 7
        %v1855 = vsub.s32 %v1852, %v1854
        %v1856 = vrot.slane %v1847, %v1855
        %v1858 = vunpack.c.l.s4 1966171168
        %v1859 = vunpack.c.0.s8 %v1858
        %v1860 = vlaneseq
        %v1861 = vshrl.u32 %v1860, 7
        %v1862 = vsub.s32 %v1859, %v1861
        %v1863 = vrot.slane %v1848, %v1862
        %v1865 = vunpack.c.l.s4 1966171168
        %v1866 = vunpack.c.0.s8 %v1865
        %v1867 = vlaneseq
        %v1868 = vshrl.u32 %v1867, 7
        %v1869 = vsub.s32 %v1866, %v1868
        %v1870 = vrot.slane %v1583, %v1869
        %v1872 = vunpack.c.l.s4 1966171168
        %v1873 = vunpack.c.0.s8 %v1872
        %v1874 = vlaneseq
        %v1875 = vshrl.u32 %v1874, 7
        %v1876 = vsub.s32 %v1873, %v1875
        %v1877 = vrot.slane %v1849, %v1876
        %v1878 = vcombine.low %v1856, %v1870
        %v1879 = vcombine.high %v1856, %v1870
        %v1880 = vcombine.low %v1863, %v1877
        %v1881 = vcombine.high %v1863, %v1877
        %v1883 = vunpack.c.l.s4 1966171168
        %v1884 = vunpack.c.0.s8 %v1883
        %v1885 = vlaneseq
        %v1886 = vshrl.u32 %v1885, 7
        %v1887 = vsub.s32 %v1884, %v1886
        %v1888 = vrot.slane %v1878, %v1887
        %v1890 = vunpack.c.l.s4 1966171168
        %v1891 = vunpack.c.0.s8 %v1890
        %v1892 = vlaneseq
        %v1893 = vshrl.u32 %v1892, 7
        %v1894 = vsub.s32 %v1891, %v1893
        %v1895 = vrot.slane %v1880, %v1894
        %v1897 = vunpack.c.l.s4 1966171168
        %v1898 = vunpack.c.0.s8 %v1897
        %v1899 = vlaneseq
        %v1900 = vshrl.u32 %v1899, 7
        %v1901 = vsub.s32 %v1898, %v1900
        %v1902 = vrot.slane %v1879, %v1901
        %v1904 = vunpack.c.l.s4 1966171168
        %v1905 = vunpack.c.0.s8 %v1904
        %v1906 = vlaneseq
        %v1907 = vshrl.u32 %v1906, 7
        %v1908 = vsub.s32 %v1905, %v1907
        %v1909 = vrot.slane %v1881, %v1908
        %v1910 = vcombine.high %v1888, %v1888
        %v1911 = vcombine.high %v1895, %v1895
        %v1912 = vcombine.high %v1902, %v1902
        %v1913 = vcombine.high %v1909, %v1909
        %v1914 = vcombine.low %v1467, %v1469
        %v1915 = vcombine.high %v1467, %v1469
        %v1916 = vcombine.high %v1588, %v1588
        %v1918 = vunpack.c.l.s4 1966171168
        %v1919 = vunpack.c.0.s8 %v1918
        %v1920 = vlaneseq
        %v1921 = vshrl.u32 %v1920, 7
        %v1922 = vsub.s32 %v1919, %v1921
        %v1923 = vrot.slane %v1914, %v1922
        %v1925 = vunpack.c.l.s4 1966171168
        %v1926 = vunpack.c.0.s8 %v1925
        %v1927 = vlaneseq
        %v1928 = vshrl.u32 %v1927, 7
        %v1929 = vsub.s32 %v1926, %v1928
        %v1930 = vrot.slane %v1915, %v1929
        %v1932 = vunpack.c.l.s4 1966171168
        %v1933 = vunpack.c.0.s8 %v1932
        %v1934 = vlaneseq
        %v1935 = vshrl.u32 %v1934, 7
        %v1936 = vsub.s32 %v1933, %v1935
        %v1937 = vrot.slane %v1588, %v1936
        %v1939 = vunpack.c.l.s4 1966171168
        %v1940 = vunpack.c.0.s8 %v1939
        %v1941 = vlaneseq
        %v1942 = vshrl.u32 %v1941, 7
        %v1943 = vsub.s32 %v1940, %v1942
        %v1944 = vrot.slane %v1916, %v1943
        %v1945 = vcombine.low %v1923, %v1937
        %v1946 = vcombine.high %v1923, %v1937
        %v1947 = vcombine.low %v1930, %v1944
        %v1948 = vcombine.high %v1930, %v1944
        %v1950 = vunpack.c.l.s4 1966171168
        %v1951 = vunpack.c.0.s8 %v1950
        %v1952 = vlaneseq
        %v1953 = vshrl.u32 %v1952, 7
        %v1954 = vsub.s32 %v1951, %v1953
        %v1955 = vrot.slane %v1945, %v1954
        %v1957 = vunpack.c.l.s4 1966171168
        %v1958 = vunpack.c.0.s8 %v1957
        %v1959 = vlaneseq
        %v1960 = vshrl.u32 %v1959, 7
        %v1961 = vsub.s32 %v1958, %v1960
        %v1962 = vrot.slane %v1947, %v1961
        %v1964 = vunpack.c.l.s4 1966171168
        %v1965 = vunpack.c.0.s8 %v1964
        %v1966 = vlaneseq
        %v1967 = vshrl.u32 %v1966, 7
        %v1968 = vsub.s32 %v1965, %v1967
        %v1969 = vrot.slane %v1946, %v1968
        %v1971 = vunpack.c.l.s4 1966171168
        %v1972 = vunpack.c.0.s8 %v1971
        %v1973 = vlaneseq
        %v1974 = vshrl.u32 %v1973, 7
        %v1975 = vsub.s32 %v1972, %v1974
        %v1976 = vrot.slane %v1948, %v1975
        %v1977 = vcombine.high %v1955, %v1955
        %v1978 = vcombine.high %v1962, %v1962
        %v1979 = vcombine.high %v1969, %v1969
        %v1980 = vcombine.high %v1976, %v1976
        %v1981 = vcombine.low %v1473, %v1475
        %v1982 = vcombine.high %v1473, %v1475
        %v1983 = vcombine.high %v1593, %v1593
        %v1985 = vunpack.c.l.s4 1966171168
        %v1986 = vunpack.c.0.s8 %v1985
        %v1987 = vlaneseq
        %v1988 = vshrl.u32 %v1987, 7
        %v1989 = vsub.s32 %v1986, %v1988
        %v1990 = vrot.slane %v1981, %v1989
        %v1992 = vunpack.c.l.s4 1966171168
        %v1993 = vunpack.c.0.s8 %v1992
        %v1994 = vlaneseq
        %v1995 = vshrl.u32 %v1994, 7
        %v1996 = vsub.s32 %v1993, %v1995
        %v1997 = vrot.slane %v1982, %v1996
        %v1999 = vunpack.c.l.s4 1966171168
        %v2000 = vunpack.c.0.s8 %v1999
        %v2001 = vlaneseq
        %v2002 = vshrl.u32 %v2001, 7
        %v2003 = vsub.s32 %v2000, %v2002
        %v2004 = vrot.slane %v1593, %v2003
        %v2006 = vunpack.c.l.s4 1966171168
        %v2007 = vunpack.c.0.s8 %v2006
        %v2008 = vlaneseq
        %v2009 = vshrl.u32 %v2008, 7
        %v2010 = vsub.s32 %v2007, %v2009
        %v2011 = vrot.slane %v1983, %v2010
        %v2012 = vcombine.low %v1990, %v2004
        %v2013 = vcombine.high %v1990, %v2004
        %v2014 = vcombine.low %v1997, %v2011
        %v2015 = vcombine.high %v1997, %v2011
        %v2017 = vunpack.c.l.s4 1966171168
        %v2018 = vunpack.c.0.s8 %v2017
        %v2019 = vlaneseq
        %v2020 = vshrl.u32 %v2019, 7
        %v2021 = vsub.s32 %v2018, %v2020
        %v2022 = vrot.slane %v2012, %v2021
        %v2024 = vunpack.c.l.s4 1966171168
        %v2025 = vunpack.c.0.s8 %v2024
        %v2026 = vlaneseq
        %v2027 = vshrl.u32 %v2026, 7
        %v2028 = vsub.s32 %v2025, %v2027
        %v2029 = vrot.slane %v2014, %v2028
        %v2031 = vunpack.c.l.s4 1966171168
        %v2032 = vunpack.c.0.s8 %v2031
        %v2033 = vlaneseq
        %v2034 = vshrl.u32 %v2033, 7
        %v2035 = vsub.s32 %v2032, %v2034
        %v2036 = vrot.slane %v2013, %v2035
        %v2038 = vunpack.c.l.s4 1966171168
        %v2039 = vunpack.c.0.s8 %v2038
        %v2040 = vlaneseq
        %v2041 = vshrl.u32 %v2040, 7
        %v2042 = vsub.s32 %v2039, %v2041
        %v2043 = vrot.slane %v2015, %v2042
        %v2044 = vcombine.high %v2022, %v2022
        %v2045 = vcombine.high %v2029, %v2029
        %v2046 = vcombine.high %v2036, %v2036
        %v2047 = vcombine.high %v2043, %v2043
        %v2048 = vcombine.low %v1479, %v1481
        %v2049 = vcombine.high %v1479, %v1481
        %v2050 = vcombine.high %v1598, %v1598
        %v2052 = vunpack.c.l.s4 1966171168
        %v2053 = vunpack.c.0.s8 %v2052
        %v2054 = vlaneseq
        %v2055 = vshrl.u32 %v2054, 7
        %v2056 = vsub.s32 %v2053, %v2055
        %v2057 = vrot.slane %v2048, %v2056
        %v2059 = vunpack.c.l.s4 1966171168
        %v2060 = vunpack.c.0.s8 %v2059
        %v2061 = vlaneseq
        %v2062 = vshrl.u32 %v2061, 7
        %v2063 = vsub.s32 %v2060, %v2062
        %v2064 = vrot.slane %v2049, %v2063
        %v2066 = vunpack.c.l.s4 1966171168
        %v2067 = vunpack.c.0.s8 %v2066
        %v2068 = vlaneseq
        %v2069 = vshrl.u32 %v2068, 7
        %v2070 = vsub.s32 %v2067, %v2069
        %v2071 = vrot.slane %v1598, %v2070
        %v2073 = vunpack.c.l.s4 1966171168
        %v2074 = vunpack.c.0.s8 %v2073
        %v2075 = vlaneseq
        %v2076 = vshrl.u32 %v2075, 7
        %v2077 = vsub.s32 %v2074, %v2076
        %v2078 = vrot.slane %v2050, %v2077
        %v2079 = vcombine.low %v2057, %v2071
        %v2080 = vcombine.high %v2057, %v2071
        %v2081 = vcombine.low %v2064, %v2078
        %v2082 = vcombine.high %v2064, %v2078
        %v2084 = vunpack.c.l.s4 1966171168
        %v2085 = vunpack.c.0.s8 %v2084
        %v2086 = vlaneseq
        %v2087 = vshrl.u32 %v2086, 7
        %v2088 = vsub.s32 %v2085, %v2087
        %v2089 = vrot.slane %v2079, %v2088
        %v2091 = vunpack.c.l.s4 1966171168
        %v2092 = vunpack.c.0.s8 %v2091
        %v2093 = vlaneseq
        %v2094 = vshrl.u32 %v2093, 7
        %v2095 = vsub.s32 %v2092, %v2094
        %v2096 = vrot.slane %v2081, %v2095
        %v2098 = vunpack.c.l.s4 1966171168
        %v2099 = vunpack.c.0.s8 %v2098
        %v2100 = vlaneseq
        %v2101 = vshrl.u32 %v2100, 7
        %v2102 = vsub.s32 %v2099, %v2101
        %v2103 = vrot.slane %v2080, %v2102
        %v2105 = vunpack.c.l.s4 1966171168
        %v2106 = vunpack.c.0.s8 %v2105
        %v2107 = vlaneseq
        %v2108 = vshrl.u32 %v2107, 7
        %v2109 = vsub.s32 %v2106, %v2108
        %v2110 = vrot.slane %v2082, %v2109
        %v2111 = vcombine.high %v2089, %v2089
        %v2112 = vcombine.high %v2096, %v2096
        %v2113 = vcombine.high %v2103, %v2103
        %v2114 = vcombine.high %v2110, %v2110
        %v2115 = vcombine.low %v1485, %v1487
        %v2116 = vcombine.high %v1485, %v1487
        %v2117 = vcombine.high %v1603, %v1603
        %v2119 = vunpack.c.l.s4 1966171168
        %v2120 = vunpack.c.0.s8 %v2119
        %v2121 = vlaneseq
        %v2122 = vshrl.u32 %v2121, 7
        %v2123 = vsub.s32 %v2120, %v2122
        %v2124 = vrot.slane %v2115, %v2123
        %v2126 = vunpack.c.l.s4 1966171168
        %v2127 = vunpack.c.0.s8 %v2126
        %v2128 = vlaneseq
        %v2129 = vshrl.u32 %v2128, 7
        %v2130 = vsub.s32 %v2127, %v2129
        %v2131 = vrot.slane %v2116, %v2130
        %v2133 = vunpack.c.l.s4 1966171168
        %v2134 = vunpack.c.0.s8 %v2133
        %v2135 = vlaneseq
        %v2136 = vshrl.u32 %v2135, 7
        %v2137 = vsub.s32 %v2134, %v2136
        %v2138 = vrot.slane %v1603, %v2137
        %v2140 = vunpack.c.l.s4 1966171168
        %v2141 = vunpack.c.0.s8 %v2140
        %v2142 = vlaneseq
        %v2143 = vshrl.u32 %v2142, 7
        %v2144 = vsub.s32 %v2141, %v2143
        %v2145 = vrot.slane %v2117, %v2144
        %v2146 = vcombine.low %v2124, %v2138
        %v2147 = vcombine.high %v2124, %v2138
        %v2148 = vcombine.low %v2131, %v2145
        %v2149 = vcombine.high %v2131, %v2145
        %v2151 = vunpack.c.l.s4 1966171168
        %v2152 = vunpack.c.0.s8 %v2151
        %v2153 = vlaneseq
        %v2154 = vshrl.u32 %v2153, 7
        %v2155 = vsub.s32 %v2152, %v2154
        %v2156 = vrot.slane %v2146, %v2155
        %v2158 = vunpack.c.l.s4 1966171168
        %v2159 = vunpack.c.0.s8 %v2158
        %v2160 = vlaneseq
        %v2161 = vshrl.u32 %v2160, 7
        %v2162 = vsub.s32 %v2159, %v2161
        %v2163 = vrot.slane %v2148, %v2162
        %v2165 = vunpack.c.l.s4 1966171168
        %v2166 = vunpack.c.0.s8 %v2165
        %v2167 = vlaneseq
        %v2168 = vshrl.u32 %v2167, 7
        %v2169 = vsub.s32 %v2166, %v2168
        %v2170 = vrot.slane %v2147, %v2169
        %v2172 = vunpack.c.l.s4 1966171168
        %v2173 = vunpack.c.0.s8 %v2172
        %v2174 = vlaneseq
        %v2175 = vshrl.u32 %v2174, 7
        %v2176 = vsub.s32 %v2173, %v2175
        %v2177 = vrot.slane %v2149, %v2176
        %v2178 = vcombine.high %v2156, %v2156
        %v2179 = vcombine.high %v2163, %v2163
        %v2180 = vcombine.high %v2170, %v2170
        %v2181 = vcombine.high %v2177, %v2177
        %v2182 = vcombine.low %v1491, %v1493
        %v2183 = vcombine.high %v1491, %v1493
        %v2184 = vcombine.high %v1608, %v1608
        %v2186 = vunpack.c.l.s4 1966171168
        %v2187 = vunpack.c.0.s8 %v2186
        %v2188 = vlaneseq
        %v2189 = vshrl.u32 %v2188, 7
        %v2190 = vsub.s32 %v2187, %v2189
        %v2191 = vrot.slane %v2182, %v2190
        %v2193 = vunpack.c.l.s4 1966171168
        %v2194 = vunpack.c.0.s8 %v2193
        %v2195 = vlaneseq
        %v2196 = vshrl.u32 %v2195, 7
        %v2197 = vsub.s32 %v2194, %v2196
        %v2198 = vrot.slane %v2183, %v2197
        %v2200 = vunpack.c.l.s4 1966171168
        %v2201 = vunpack.c.0.s8 %v2200
        %v2202 = vlaneseq
        %v2203 = vshrl.u32 %v2202, 7
        %v2204 = vsub.s32 %v2201, %v2203
        %v2205 = vrot.slane %v1608, %v2204
        %v2207 = vunpack.c.l.s4 1966171168
        %v2208 = vunpack.c.0.s8 %v2207
        %v2209 = vlaneseq
        %v2210 = vshrl.u32 %v2209, 7
        %v2211 = vsub.s32 %v2208, %v2210
        %v2212 = vrot.slane %v2184, %v2211
        %v2213 = vcombine.low %v2191, %v2205
        %v2214 = vcombine.high %v2191, %v2205
        %v2215 = vcombine.low %v2198, %v2212
        %v2216 = vcombine.high %v2198, %v2212
        %v2218 = vunpack.c.l.s4 1966171168
        %v2219 = vunpack.c.0.s8 %v2218
        %v2220 = vlaneseq
        %v2221 = vshrl.u32 %v2220, 7
        %v2222 = vsub.s32 %v2219, %v2221
        %v2223 = vrot.slane %v2213, %v2222
        %v2225 = vunpack.c.l.s4 1966171168
        %v2226 = vunpack.c.0.s8 %v2225
        %v2227 = vlaneseq
        %v2228 = vshrl.u32 %v2227, 7
        %v2229 = vsub.s32 %v2226, %v2228
        %v2230 = vrot.slane %v2215, %v2229
        %v2232 = vunpack.c.l.s4 1966171168
        %v2233 = vunpack.c.0.s8 %v2232
        %v2234 = vlaneseq
        %v2235 = vshrl.u32 %v2234, 7
        %v2236 = vsub.s32 %v2233, %v2235
        %v2237 = vrot.slane %v2214, %v2236
        %v2239 = vunpack.c.l.s4 1966171168
        %v2240 = vunpack.c.0.s8 %v2239
        %v2241 = vlaneseq
        %v2242 = vshrl.u32 %v2241, 7
        %v2243 = vsub.s32 %v2240, %v2242
        %v2244 = vrot.slane %v2216, %v2243
        %v2245 = vcombine.high %v2223, %v2223
        %v2246 = vcombine.high %v2230, %v2230
        %v2247 = vcombine.high %v2237, %v2237
        %v2248 = vcombine.high %v2244, %v2244
        %v2249 = vcombine.low %v1497, %v1499
        %v2250 = vcombine.high %v1497, %v1499
        %v2251 = vcombine.high %v1613, %v1613
        %v2253 = vunpack.c.l.s4 1966171168
        %v2254 = vunpack.c.0.s8 %v2253
        %v2255 = vlaneseq
        %v2256 = vshrl.u32 %v2255, 7
        %v2257 = vsub.s32 %v2254, %v2256
        %v2258 = vrot.slane %v2249, %v2257
        %v2260 = vunpack.c.l.s4 1966171168
        %v2261 = vunpack.c.0.s8 %v2260
        %v2262 = vlaneseq
        %v2263 = vshrl.u32 %v2262, 7
        %v2264 = vsub.s32 %v2261, %v2263
        %v2265 = vrot.slane %v2250, %v2264
        %v2267 = vunpack.c.l.s4 1966171168
        %v2268 = vunpack.c.0.s8 %v2267
        %v2269 = vlaneseq
        %v2270 = vshrl.u32 %v2269, 7
        %v2271 = vsub.s32 %v2268, %v2270
        %v2272 = vrot.slane %v1613, %v2271
        %v2274 = vunpack.c.l.s4 1966171168
        %v2275 = vunpack.c.0.s8 %v2274
        %v2276 = vlaneseq
        %v2277 = vshrl.u32 %v2276, 7
        %v2278 = vsub.s32 %v2275, %v2277
        %v2279 = vrot.slane %v2251, %v2278
        %v2280 = vcombine.low %v2258, %v2272
        %v2281 = vcombine.high %v2258, %v2272
        %v2282 = vcombine.low %v2265, %v2279
        %v2283 = vcombine.high %v2265, %v2279
        %v2285 = vunpack.c.l.s4 1966171168
        %v2286 = vunpack.c.0.s8 %v2285
        %v2287 = vlaneseq
        %v2288 = vshrl.u32 %v2287, 7
        %v2289 = vsub.s32 %v2286, %v2288
        %v2290 = vrot.slane %v2280, %v2289
        %v2292 = vunpack.c.l.s4 1966171168
        %v2293 = vunpack.c.0.s8 %v2292
        %v2294 = vlaneseq
        %v2295 = vshrl.u32 %v2294, 7
        %v2296 = vsub.s32 %v2293, %v2295
        %v2297 = vrot.slane %v2282, %v2296
        %v2299 = vunpack.c.l.s4 1966171168
        %v2300 = vunpack.c.0.s8 %v2299
        %v2301 = vlaneseq
        %v2302 = vshrl.u32 %v2301, 7
        %v2303 = vsub.s32 %v2300, %v2302
        %v2304 = vrot.slane %v2281, %v2303
        %v2306 = vunpack.c.l.s4 1966171168
        %v2307 = vunpack.c.0.s8 %v2306
        %v2308 = vlaneseq
        %v2309 = vshrl.u32 %v2308, 7
        %v2310 = vsub.s32 %v2307, %v2309
        %v2311 = vrot.slane %v2283, %v2310
        %v2312 = vcombine.high %v2290, %v2290
        %v2313 = vcombine.high %v2297, %v2297
        %v2314 = vcombine.high %v2304, %v2304
        %v2315 = vcombine.high %v2311, %v2311
        %v2364 = vrot.slane %v1701, 1
        %v2365 = vrot.slane %v1709, 1
        %v2366 = vrot.slane %v1711, 1
        %v2367 = vrot.slane %v1710, 1
        %v2368 = vrot.slane %v1712, 1
        %v2369 = vrot.slane %v1754, 1
        %v2370 = vrot.slane %v1778, 1
        %v2371 = vrot.slane %v1761, 1
        %v2372 = vrot.slane %v1775, 1
        %v2373 = vrot.slane %v1821, 1
        %v2374 = vrot.slane %v1835, 1
        %v2375 = vrot.slane %v1843, 1
        %v2376 = vrot.slane %v1842, 1
        %v2377 = vrot.slane %v1844, 1
        %v2378 = vrot.slane %v1846, 1
        %v2379 = vrot.slane %v1910, 1
        %v2380 = vrot.slane %v1912, 1
        %v2381 = vrot.slane %v1895, 1
        %v2382 = vrot.slane %v1913, 1
        %v2383 = vrot.slane %v1955, 1
        %v2384 = vrot.slane %v1969, 1
        %v2385 = vrot.slane %v1962, 1
        %v2386 = vrot.slane %v1976, 1
        %v2387 = vrot.slane %v1978, 1
        %v2388 = vrot.slane %v2036, 1
        %v2389 = vrot.slane %v2044, 1
        %v2390 = vrot.slane %v2046, 1
        %v2391 = vrot.slane %v2045, 1
        %v2392 = vrot.slane %v2047, 1
        %v2393 = vrot.slane %v2089, 1
        %v2394 = vrot.slane %v2113, 1
        %v2395 = vrot.slane %v2096, 1
        %v2396 = vrot.slane %v2110, 1
        %v2397 = vrot.slane %v2156, 1
        %v2398 = vrot.slane %v2170, 1
        %v2399 = vrot.slane %v2178, 1
        %v2400 = vrot.slane %v2177, 1
        %v2401 = vrot.slane %v2179, 1
        %v2402 = vrot.slane %v2181, 1
        %v2403 = vrot.slane %v2245, 1
        %v2404 = vrot.slane %v2247, 1
        %v2405 = vrot.slane %v2230, 1
        %v2406 = vrot.slane %v2248, 1
        %v2407 = vrot.slane %v2290, 1
        %v2408 = vrot.slane %v2304, 1
        %v2409 = vrot.slane %v2297, 1
        %v2410 = vrot.slane %v2311, 1
        %v2411 = vrot.slane %v2313, 1
        %v2460 = vadd.f32 %v1687, %v2364
        %v2461 = vadd.f32 %v1701, %v2365
        %v2462 = vadd.f32 %v1709, %v2366
        %v2463 = vadd.f32 %v1708, %v2367
        %v2464 = vadd.f32 %v1710, %v2368
        %v2465 = vadd.f32 %v1712, %v2369
        %v2466 = vadd.f32 %v1776, %v2370
        %v2467 = vadd.f32 %v1778, %v2371
        %v2468 = vadd.f32 %v1761, %v2372
        %v2469 = vadd.f32 %v1779, %v2373
        %v2470 = vadd.f32 %v1821, %v2374
        %v2471 = vadd.f32 %v1835, %v2375
        %v2472 = vadd.f32 %v1828, %v2376
        %v2473 = vadd.f32 %v1842, %v2377
        %v2474 = vadd.f32 %v1844, %v2378
        %v2475 = vadd.f32 %v1902, %v2379
        %v2476 = vadd.f32 %v1910, %v2380
        %v2477 = vadd.f32 %v1912, %v2381
        %v2478 = vadd.f32 %v1911, %v2382
        %v2479 = vadd.f32 %v1913, %v2383
        %v2480 = vadd.f32 %v1955, %v2384
        %v2481 = vadd.f32 %v1979, %v2385
        %v2482 = vadd.f32 %v1962, %v2386
        %v2483 = vadd.f32 %v1976, %v2387
        %v2484 = vadd.f32 %v2022, %v2388
        %v2485 = vadd.f32 %v2036, %v2389
        %v2486 = vadd.f32 %v2044, %v2390
        %v2487 = vadd.f32 %v2043, %v2391
        %v2488 = vadd.f32 %v2045, %v2392
        %v2489 = vadd.f32 %v2047, %v2393
        %v2490 = vadd.f32 %v2111, %v2394
        %v2491 = vadd.f32 %v2113, %v2395
        %v2492 = vadd.f32 %v2096, %v2396
        %v2493 = vadd.f32 %v2114, %v2397
        %v2494 = vadd.f32 %v2156, %v2398
        %v2495 = vadd.f32 %v2170, %v2399
        %v2496 = vadd.f32 %v2163, %v2400
        %v2497 = vadd.f32 %v2177, %v2401
        %v2498 = vadd.f32 %v2179, %v2402
        %v2499 = vadd.f32 %v2237, %v2403
        %v2500 = vadd.f32 %v2245, %v2404
        %v2501 = vadd.f32 %v2247, %v2405
        %v2502 = vadd.f32 %v2246, %v2406
        %v2503 = vadd.f32 %v2248, %v2407
        %v2504 = vadd.f32 %v2290, %v2408
        %v2505 = vadd.f32 %v2314, %v2409
        %v2506 = vadd.f32 %v2297, %v2410
        %v2507 = vadd.f32 %v2311, %v2411
        %v2508 = vrot.slane %v1709, 2
        %v2509 = vrot.slane %v1711, 2
        %v2510 = vrot.slane %v1694, 2
        %v2511 = vrot.slane %v1712, 2
        %v2512 = vrot.slane %v1754, 2
        %v2513 = vrot.slane %v1768, 2
        %v2514 = vrot.slane %v1761, 2
        %v2515 = vrot.slane %v1775, 2
        %v2516 = vrot.slane %v1777, 2
        %v2517 = vrot.slane %v1835, 2
        %v2518 = vrot.slane %v1843, 2
        %v2519 = vrot.slane %v1845, 2
        %v2520 = vrot.slane %v1844, 2
        %v2521 = vrot.slane %v1846, 2
        %v2522 = vrot.slane %v1888, 2
        %v2523 = vrot.slane %v1912, 2
        %v2524 = vrot.slane %v1895, 2
        %v2525 = vrot.slane %v1909, 2
        %v2526 = vrot.slane %v1955, 2
        %v2527 = vrot.slane %v1969, 2
        %v2528 = vrot.slane %v1977, 2
        %v2529 = vrot.slane %v1976, 2
        %v2530 = vrot.slane %v1978, 2
        %v2531 = vrot.slane %v1980, 2
        %v2532 = vrot.slane %v2044, 2
        %v2533 = vrot.slane %v2046, 2
        %v2534 = vrot.slane %v2029, 2
        %v2535 = vrot.slane %v2047, 2
        %v2536 = vrot.slane %v2089, 2
        %v2537 = vrot.slane %v2103, 2
        %v2538 = vrot.slane %v2096, 2
        %v2539 = vrot.slane %v2110, 2
        %v2540 = vrot.slane %v2112, 2
        %v2541 = vrot.slane %v2170, 2
        %v2542 = vrot.slane %v2178, 2
        %v2543 = vrot.slane %v2180, 2
        %v2544 = vrot.slane %v2179, 2
        %v2545 = vrot.slane %v2181, 2
        %v2546 = vrot.slane %v2223, 2
        %v2547 = vrot.slane %v2247, 2
        %v2548 = vrot.slane %v2230, 2
        %v2549 = vrot.slane %v2244, 2
        %v2550 = vrot.slane %v2290, 2
        %v2551 = vrot.slane %v2304, 2
        %v2552 = vrot.slane %v2312, 2
        %v2553 = vrot.slane %v2311, 2
        %v2554 = vrot.slane %v2313, 2
        %v2555 = vrot.slane %v2315, 2
        %v2604 = vadd.f32 %v2460, %v2508
        %v2605 = vadd.f32 %v2461, %v2509
        %v2606 = vadd.f32 %v2462, %v2510
        %v2607 = vadd.f32 %v2463, %v2511
        %v2608 = vadd.f32 %v2464, %v2512
        %v2609 = vadd.f32 %v2465, %v2513
        %v2610 = vadd.f32 %v2466, %v2514
        %v2611 = vadd.f32 %v2467, %v2515
        %v2612 = vadd.f32 %v2468, %v2516
        %v2613 = vadd.f32 %v2469, %v2517
        %v2614 = vadd.f32 %v2470, %v2518
        %v2615 = vadd.f32 %v2471, %v2519
        %v2616 = vadd.f32 %v2472, %v2520
        %v2617 = vadd.f32 %v2473, %v2521
        %v2618 = vadd.f32 %v2474, %v2522
        %v2619 = vadd.f32 %v2475, %v2523
        %v2620 = vadd.f32 %v2476, %v2524
        %v2621 = vadd.f32 %v2477, %v2525
        %v2622 = vadd.f32 %v2478, %v2526
        %v2623 = vadd.f32 %v2479, %v2527
        %v2624 = vadd.f32 %v2480, %v2528
        %v2625 = vadd.f32 %v2481, %v2529
        %v2626 = vadd.f32 %v2482, %v2530
        %v2627 = vadd.f32 %v2483, %v2531
        %v2628 = vadd.f32 %v2484, %v2532
        %v2629 = vadd.f32 %v2485, %v2533
        %v2630 = vadd.f32 %v2486, %v2534
        %v2631 = vadd.f32 %v2487, %v2535
        %v2632 = vadd.f32 %v2488, %v2536
        %v2633 = vadd.f32 %v2489, %v2537
        %v2634 = vadd.f32 %v2490, %v2538
        %v2635 = vadd.f32 %v2491, %v2539
        %v2636 = vadd.f32 %v2492, %v2540
        %v2637 = vadd.f32 %v2493, %v2541
        %v2638 = vadd.f32 %v2494, %v2542
        %v2639 = vadd.f32 %v2495, %v2543
        %v2640 = vadd.f32 %v2496, %v2544
        %v2641 = vadd.f32 %v2497, %v2545
        %v2642 = vadd.f32 %v2498, %v2546
        %v2643 = vadd.f32 %v2499, %v2547
        %v2644 = vadd.f32 %v2500, %v2548
        %v2645 = vadd.f32 %v2501, %v2549
        %v2646 = vadd.f32 %v2502, %v2550
        %v2647 = vadd.f32 %v2503, %v2551
        %v2648 = vadd.f32 %v2504, %v2552
        %v2649 = vadd.f32 %v2505, %v2553
        %v2650 = vadd.f32 %v2506, %v2554
        %v2651 = vadd.f32 %v2507, %v2555
        %v2700 = vcombine.low %v2604, %v2605
        %v2702 = vunpack.c.l.s4 1966171168
        %v2703 = vunpack.c.0.s8 %v2702
        %v2704 = vlaneseq
        %v2705 = vshrl.u32 %v2704, 7
        %v2706 = vsub.s32 %v2703, %v2705
        %v2707 = vrot.slane %v2700, %v2706
        %v2709 = vunpack.c.l.s4 1966171168
        %v2710 = vunpack.c.0.s8 %v2709
        %v2711 = vlaneseq
        %v2712 = vshrl.u32 %v2711, 7
        %v2713 = vsub.s32 %v2710, %v2712
        %v2714 = vrot.slane %v2606, %v2713
        %v2715 = vcombine.low %v2707, %v2714
        %v2717 = vunpack.c.l.s4 1966171168
        %v2718 = vunpack.c.0.s8 %v2717
        %v2719 = vlaneseq
        %v2720 = vshrl.u32 %v2719, 7
        %v2721 = vsub.s32 %v2718, %v2720
        %v2722 = vrot.slane %v2715, %v2721
        %v2723 = vcombine.low %v2607, %v2608
        %v2725 = vunpack.c.l.s4 1966171168
        %v2726 = vunpack.c.0.s8 %v2725
        %v2727 = vlaneseq
        %v2728 = vshrl.u32 %v2727, 7
        %v2729 = vsub.s32 %v2726, %v2728
        %v2730 = vrot.slane %v2723, %v2729
        %v2732 = vunpack.c.l.s4 1966171168
        %v2733 = vunpack.c.0.s8 %v2732
        %v2734 = vlaneseq
        %v2735 = vshrl.u32 %v2734, 7
        %v2736 = vsub.s32 %v2733, %v2735
        %v2737 = vrot.slane %v2609, %v2736
        %v2738 = vcombine.low %v2730, %v2737
        %v2740 = vunpack.c.l.s4 1966171168
        %v2741 = vunpack.c.0.s8 %v2740
        %v2742 = vlaneseq
        %v2743 = vshrl.u32 %v2742, 7
        %v2744 = vsub.s32 %v2741, %v2743
        %v2745 = vrot.slane %v2738, %v2744
        %v2746 = vcombine.low %v2610, %v2611
        %v2748 = vunpack.c.l.s4 1966171168
        %v2749 = vunpack.c.0.s8 %v2748
        %v2750 = vlaneseq
        %v2751 = vshrl.u32 %v2750, 7
        %v2752 = vsub.s32 %v2749, %v2751
        %v2753 = vrot.slane %v2746, %v2752
        %v2755 = vunpack.c.l.s4 1966171168
        %v2756 = vunpack.c.0.s8 %v2755
        %v2757 = vlaneseq
        %v2758 = vshrl.u32 %v2757, 7
        %v2759 = vsub.s32 %v2756, %v2758
        %v2760 = vrot.slane %v2612, %v2759
        %v2761 = vcombine.low %v2753, %v2760
        %v2763 = vunpack.c.l.s4 1966171168
        %v2764 = vunpack.c.0.s8 %v2763
        %v2765 = vlaneseq
        %v2766 = vshrl.u32 %v2765, 7
        %v2767 = vsub.s32 %v2764, %v2766
        %v2768 = vrot.slane %v2761, %v2767
        %v2769 = vcombine.low %v2613, %v2614
        %v2771 = vunpack.c.l.s4 1966171168
        %v2772 = vunpack.c.0.s8 %v2771
        %v2773 = vlaneseq
        %v2774 = vshrl.u32 %v2773, 7
        %v2775 = vsub.s32 %v2772, %v2774
        %v2776 = vrot.slane %v2769, %v2775
        %v2778 = vunpack.c.l.s4 1966171168
        %v2779 = vunpack.c.0.s8 %v2778
        %v2780 = vlaneseq
        %v2781 = vshrl.u32 %v2780, 7
        %v2782 = vsub.s32 %v2779, %v2781
        %v2783 = vrot.slane %v2615, %v2782
        %v2784 = vcombine.low %v2776, %v2783
        %v2786 = vunpack.c.l.s4 1966171168
        %v2787 = vunpack.c.0.s8 %v2786
        %v2788 = vlaneseq
        %v2789 = vshrl.u32 %v2788, 7
        %v2790 = vsub.s32 %v2787, %v2789
        %v2791 = vrot.slane %v2784, %v2790
        %v2792 = vcombine.low %v2616, %v2617
        %v2794 = vunpack.c.l.s4 1966171168
        %v2795 = vunpack.c.0.s8 %v2794
        %v2796 = vlaneseq
        %v2797 = vshrl.u32 %v2796, 7
        %v2798 = vsub.s32 %v2795, %v2797
        %v2799 = vrot.slane %v2792, %v2798
        %v2801 = vunpack.c.l.s4 1966171168
        %v2802 = vunpack.c.0.s8 %v2801
        %v2803 = vlaneseq
        %v2804 = vshrl.u32 %v2803, 7
        %v2805 = vsub.s32 %v2802, %v2804
        %v2806 = vrot.slane %v2618, %v2805
        %v2807 = vcombine.low %v2799, %v2806
        %v2809 = vunpack.c.l.s4 1966171168
        %v2810 = vunpack.c.0.s8 %v2809
        %v2811 = vlaneseq
        %v2812 = vshrl.u32 %v2811, 7
        %v2813 = vsub.s32 %v2810, %v2812
        %v2814 = vrot.slane %v2807, %v2813
        %v2815 = vcombine.low %v2619, %v2620
        %v2817 = vunpack.c.l.s4 1966171168
        %v2818 = vunpack.c.0.s8 %v2817
        %v2819 = vlaneseq
        %v2820 = vshrl.u32 %v2819, 7
        %v2821 = vsub.s32 %v2818, %v2820
        %v2822 = vrot.slane %v2815, %v2821
        %v2824 = vunpack.c.l.s4 1966171168
        %v2825 = vunpack.c.0.s8 %v2824
        %v2826 = vlaneseq
        %v2827 = vshrl.u32 %v2826, 7
        %v2828 = vsub.s32 %v2825, %v2827
        %v2829 = vrot.slane %v2621, %v2828
        %v2830 = vcombine.low %v2822, %v2829
        %v2832 = vunpack.c.l.s4 1966171168
        %v2833 = vunpack.c.0.s8 %v2832
        %v2834 = vlaneseq
        %v2835 = vshrl.u32 %v2834, 7
        %v2836 = vsub.s32 %v2833, %v2835
        %v2837 = vrot.slane %v2830, %v2836
        %v2838 = vcombine.low %v2622, %v2623
        %v2840 = vunpack.c.l.s4 1966171168
        %v2841 = vunpack.c.0.s8 %v2840
        %v2842 = vlaneseq
        %v2843 = vshrl.u32 %v2842, 7
        %v2844 = vsub.s32 %v2841, %v2843
        %v2845 = vrot.slane %v2838, %v2844
        %v2847 = vunpack.c.l.s4 1966171168
        %v2848 = vunpack.c.0.s8 %v2847
        %v2849 = vlaneseq
        %v2850 = vshrl.u32 %v2849, 7
        %v2851 = vsub.s32 %v2848, %v2850
        %v2852 = vrot.slane %v2624, %v2851
        %v2853 = vcombine.low %v2845, %v2852
        %v2855 = vunpack.c.l.s4 1966171168
        %v2856 = vunpack.c.0.s8 %v2855
        %v2857 = vlaneseq
        %v2858 = vshrl.u32 %v2857, 7
        %v2859 = vsub.s32 %v2856, %v2858
        %v2860 = vrot.slane %v2853, %v2859
        %v2861 = vcombine.low %v2625, %v2626
        %v2863 = vunpack.c.l.s4 1966171168
        %v2864 = vunpack.c.0.s8 %v2863
        %v2865 = vlaneseq
        %v2866 = vshrl.u32 %v2865, 7
        %v2867 = vsub.s32 %v2864, %v2866
        %v2868 = vrot.slane %v2861, %v2867
        %v2870 = vunpack.c.l.s4 1966171168
        %v2871 = vunpack.c.0.s8 %v2870
        %v2872 = vlaneseq
        %v2873 = vshrl.u32 %v2872, 7
        %v2874 = vsub.s32 %v2871, %v2873
        %v2875 = vrot.slane %v2627, %v2874
        %v2876 = vcombine.low %v2868, %v2875
        %v2878 = vunpack.c.l.s4 1966171168
        %v2879 = vunpack.c.0.s8 %v2878
        %v2880 = vlaneseq
        %v2881 = vshrl.u32 %v2880, 7
        %v2882 = vsub.s32 %v2879, %v2881
        %v2883 = vrot.slane %v2876, %v2882
        %v2884 = vcombine.low %v2628, %v2629
        %v2886 = vunpack.c.l.s4 1966171168
        %v2887 = vunpack.c.0.s8 %v2886
        %v2888 = vlaneseq
        %v2889 = vshrl.u32 %v2888, 7
        %v2890 = vsub.s32 %v2887, %v2889
        %v2891 = vrot.slane %v2884, %v2890
        %v2893 = vunpack.c.l.s4 1966171168
        %v2894 = vunpack.c.0.s8 %v2893
        %v2895 = vlaneseq
        %v2896 = vshrl.u32 %v2895, 7
        %v2897 = vsub.s32 %v2894, %v2896
        %v2898 = vrot.slane %v2630, %v2897
        %v2899 = vcombine.low %v2891, %v2898
        %v2901 = vunpack.c.l.s4 1966171168
        %v2902 = vunpack.c.0.s8 %v2901
        %v2903 = vlaneseq
        %v2904 = vshrl.u32 %v2903, 7
        %v2905 = vsub.s32 %v2902, %v2904
        %v2906 = vrot.slane %v2899, %v2905
        %v2907 = vcombine.low %v2631, %v2632
        %v2909 = vunpack.c.l.s4 1966171168
        %v2910 = vunpack.c.0.s8 %v2909
        %v2911 = vlaneseq
        %v2912 = vshrl.u32 %v2911, 7
        %v2913 = vsub.s32 %v2910, %v2912
        %v2914 = vrot.slane %v2907, %v2913
        %v2916 = vunpack.c.l.s4 1966171168
        %v2917 = vunpack.c.0.s8 %v2916
        %v2918 = vlaneseq
        %v2919 = vshrl.u32 %v2918, 7
        %v2920 = vsub.s32 %v2917, %v2919
        %v2921 = vrot.slane %v2633, %v2920
        %v2922 = vcombine.low %v2914, %v2921
        %v2924 = vunpack.c.l.s4 1966171168
        %v2925 = vunpack.c.0.s8 %v2924
        %v2926 = vlaneseq
        %v2927 = vshrl.u32 %v2926, 7
        %v2928 = vsub.s32 %v2925, %v2927
        %v2929 = vrot.slane %v2922, %v2928
        %v2930 = vcombine.low %v2634, %v2635
        %v2932 = vunpack.c.l.s4 1966171168
        %v2933 = vunpack.c.0.s8 %v2932
        %v2934 = vlaneseq
        %v2935 = vshrl.u32 %v2934, 7
        %v2936 = vsub.s32 %v2933, %v2935
        %v2937 = vrot.slane %v2930, %v2936
        %v2939 = vunpack.c.l.s4 1966171168
        %v2940 = vunpack.c.0.s8 %v2939
        %v2941 = vlaneseq
        %v2942 = vshrl.u32 %v2941, 7
        %v2943 = vsub.s32 %v2940, %v2942
        %v2944 = vrot.slane %v2636, %v2943
        %v2945 = vcombine.low %v2937, %v2944
        %v2947 = vunpack.c.l.s4 1966171168
        %v2948 = vunpack.c.0.s8 %v2947
        %v2949 = vlaneseq
        %v2950 = vshrl.u32 %v2949, 7
        %v2951 = vsub.s32 %v2948, %v2950
        %v2952 = vrot.slane %v2945, %v2951
        %v2953 = vcombine.low %v2637, %v2638
        %v2955 = vunpack.c.l.s4 1966171168
        %v2956 = vunpack.c.0.s8 %v2955
        %v2957 = vlaneseq
        %v2958 = vshrl.u32 %v2957, 7
        %v2959 = vsub.s32 %v2956, %v2958
        %v2960 = vrot.slane %v2953, %v2959
        %v2962 = vunpack.c.l.s4 1966171168
        %v2963 = vunpack.c.0.s8 %v2962
        %v2964 = vlaneseq
        %v2965 = vshrl.u32 %v2964, 7
        %v2966 = vsub.s32 %v2963, %v2965
        %v2967 = vrot.slane %v2639, %v2966
        %v2968 = vcombine.low %v2960, %v2967
        %v2970 = vunpack.c.l.s4 1966171168
        %v2971 = vunpack.c.0.s8 %v2970
        %v2972 = vlaneseq
        %v2973 = vshrl.u32 %v2972, 7
        %v2974 = vsub.s32 %v2971, %v2973
        %v2975 = vrot.slane %v2968, %v2974
        %v2976 = vcombine.low %v2640, %v2641
        %v2978 = vunpack.c.l.s4 1966171168
        %v2979 = vunpack.c.0.s8 %v2978
        %v2980 = vlaneseq
        %v2981 = vshrl.u32 %v2980, 7
        %v2982 = vsub.s32 %v2979, %v2981
        %v2983 = vrot.slane %v2976, %v2982
        %v2985 = vunpack.c.l.s4 1966171168
        %v2986 = vunpack.c.0.s8 %v2985
        %v2987 = vlaneseq
        %v2988 = vshrl.u32 %v2987, 7
        %v2989 = vsub.s32 %v2986, %v2988
        %v2990 = vrot.slane %v2642, %v2989
        %v2991 = vcombine.low %v2983, %v2990
        %v2993 = vunpack.c.l.s4 1966171168
        %v2994 = vunpack.c.0.s8 %v2993
        %v2995 = vlaneseq
        %v2996 = vshrl.u32 %v2995, 7
        %v2997 = vsub.s32 %v2994, %v2996
        %v2998 = vrot.slane %v2991, %v2997
        %v2999 = vcombine.low %v2643, %v2644
        %v3001 = vunpack.c.l.s4 1966171168
        %v3002 = vunpack.c.0.s8 %v3001
        %v3003 = vlaneseq
        %v3004 = vshrl.u32 %v3003, 7
        %v3005 = vsub.s32 %v3002, %v3004
        %v3006 = vrot.slane %v2999, %v3005
        %v3008 = vunpack.c.l.s4 1966171168
        %v3009 = vunpack.c.0.s8 %v3008
        %v3010 = vlaneseq
        %v3011 = vshrl.u32 %v3010, 7
        %v3012 = vsub.s32 %v3009, %v3011
        %v3013 = vrot.slane %v2645, %v3012
        %v3014 = vcombine.low %v3006, %v3013
        %v3016 = vunpack.c.l.s4 1966171168
        %v3017 = vunpack.c.0.s8 %v3016
        %v3018 = vlaneseq
        %v3019 = vshrl.u32 %v3018, 7
        %v3020 = vsub.s32 %v3017, %v3019
        %v3021 = vrot.slane %v3014, %v3020
        %v3022 = vcombine.low %v2646, %v2647
        %v3024 = vunpack.c.l.s4 1966171168
        %v3025 = vunpack.c.0.s8 %v3024
        %v3026 = vlaneseq
        %v3027 = vshrl.u32 %v3026, 7
        %v3028 = vsub.s32 %v3025, %v3027
        %v3029 = vrot.slane %v3022, %v3028
        %v3031 = vunpack.c.l.s4 1966171168
        %v3032 = vunpack.c.0.s8 %v3031
        %v3033 = vlaneseq
        %v3034 = vshrl.u32 %v3033, 7
        %v3035 = vsub.s32 %v3032, %v3034
        %v3036 = vrot.slane %v2648, %v3035
        %v3037 = vcombine.low %v3029, %v3036
        %v3039 = vunpack.c.l.s4 1966171168
        %v3040 = vunpack.c.0.s8 %v3039
        %v3041 = vlaneseq
        %v3042 = vshrl.u32 %v3041, 7
        %v3043 = vsub.s32 %v3040, %v3042
        %v3044 = vrot.slane %v3037, %v3043
        %v3045 = vcombine.low %v2649, %v2650
        %v3047 = vunpack.c.l.s4 1966171168
        %v3048 = vunpack.c.0.s8 %v3047
        %v3049 = vlaneseq
        %v3050 = vshrl.u32 %v3049, 7
        %v3051 = vsub.s32 %v3048, %v3050
        %v3052 = vrot.slane %v3045, %v3051
        %v3054 = vunpack.c.l.s4 1966171168
        %v3055 = vunpack.c.0.s8 %v3054
        %v3056 = vlaneseq
        %v3057 = vshrl.u32 %v3056, 7
        %v3058 = vsub.s32 %v3055, %v3057
        %v3059 = vrot.slane %v2651, %v3058
        %v3060 = vcombine.low %v3052, %v3059
        %v3062 = vunpack.c.l.s4 1966171168
        %v3063 = vunpack.c.0.s8 %v3062
        %v3064 = vlaneseq
        %v3065 = vshrl.u32 %v3064, 7
        %v3066 = vsub.s32 %v3063, %v3065
        %v3067 = vrot.slane %v3060, %v3066
        %vm3084 = vcmask 1042432
        %v3085 = vsel %vm3084, %v2722, -inf
        %v3086 = vrot.slane %v3085, 4
        %v3087 = vmax.f32 %v3085, %v3086
        %v3088 = vrot.slane %v3087, 2
        %v3089 = vmax.f32 %v3087, %v3088
        %v3090 = vrot.slane %v3089, 1
        %v3091 = vmax.f32 %v3089, %v3090
        %v3092 = vsel %vm3084, %v2745, -inf
        %v3093 = vrot.slane %v3092, 4
        %v3094 = vmax.f32 %v3092, %v3093
        %v3095 = vrot.slane %v3094, 2
        %v3096 = vmax.f32 %v3094, %v3095
        %v3097 = vrot.slane %v3096, 1
        %v3098 = vmax.f32 %v3096, %v3097
        %v3099 = vsel %vm3084, %v2768, -inf
        %v3100 = vrot.slane %v3099, 4
        %v3101 = vmax.f32 %v3099, %v3100
        %v3102 = vrot.slane %v3101, 2
        %v3103 = vmax.f32 %v3101, %v3102
        %v3104 = vrot.slane %v3103, 1
        %v3105 = vmax.f32 %v3103, %v3104
        %v3106 = vsel %vm3084, %v2791, -inf
        %v3107 = vrot.slane %v3106, 4
        %v3108 = vmax.f32 %v3106, %v3107
        %v3109 = vrot.slane %v3108, 2
        %v3110 = vmax.f32 %v3108, %v3109
        %v3111 = vrot.slane %v3110, 1
        %v3112 = vmax.f32 %v3110, %v3111
        %v3113 = vsel %vm3084, %v2814, -inf
        %v3114 = vrot.slane %v3113, 4
        %v3115 = vmax.f32 %v3113, %v3114
        %v3116 = vrot.slane %v3115, 2
        %v3117 = vmax.f32 %v3115, %v3116
        %v3118 = vrot.slane %v3117, 1
        %v3119 = vmax.f32 %v3117, %v3118
        %v3120 = vsel %vm3084, %v2837, -inf
        %v3121 = vrot.slane %v3120, 4
        %v3122 = vmax.f32 %v3120, %v3121
        %v3123 = vrot.slane %v3122, 2
        %v3124 = vmax.f32 %v3122, %v3123
        %v3125 = vrot.slane %v3124, 1
        %v3126 = vmax.f32 %v3124, %v3125
        %v3127 = vsel %vm3084, %v2860, -inf
        %v3128 = vrot.slane %v3127, 4
        %v3129 = vmax.f32 %v3127, %v3128
        %v3130 = vrot.slane %v3129, 2
        %v3131 = vmax.f32 %v3129, %v3130
        %v3132 = vrot.slane %v3131, 1
        %v3133 = vmax.f32 %v3131, %v3132
        %v3134 = vsel %vm3084, %v2883, -inf
        %v3135 = vrot.slane %v3134, 4
        %v3136 = vmax.f32 %v3134, %v3135
        %v3137 = vrot.slane %v3136, 2
        %v3138 = vmax.f32 %v3136, %v3137
        %v3139 = vrot.slane %v3138, 1
        %v3140 = vmax.f32 %v3138, %v3139
        %v3141 = vsel %vm3084, %v2906, -inf
        %v3142 = vrot.slane %v3141, 4
        %v3143 = vmax.f32 %v3141, %v3142
        %v3144 = vrot.slane %v3143, 2
        %v3145 = vmax.f32 %v3143, %v3144
        %v3146 = vrot.slane %v3145, 1
        %v3147 = vmax.f32 %v3145, %v3146
        %v3148 = vsel %vm3084, %v2929, -inf
        %v3149 = vrot.slane %v3148, 4
        %v3150 = vmax.f32 %v3148, %v3149
        %v3151 = vrot.slane %v3150, 2
        %v3152 = vmax.f32 %v3150, %v3151
        %v3153 = vrot.slane %v3152, 1
        %v3154 = vmax.f32 %v3152, %v3153
        %v3155 = vsel %vm3084, %v2952, -inf
        %v3156 = vrot.slane %v3155, 4
        %v3157 = vmax.f32 %v3155, %v3156
        %v3158 = vrot.slane %v3157, 2
        %v3159 = vmax.f32 %v3157, %v3158
        %v3160 = vrot.slane %v3159, 1
        %v3161 = vmax.f32 %v3159, %v3160
        %v3162 = vsel %vm3084, %v2975, -inf
        %v3163 = vrot.slane %v3162, 4
        %v3164 = vmax.f32 %v3162, %v3163
        %v3165 = vrot.slane %v3164, 2
        %v3166 = vmax.f32 %v3164, %v3165
        %v3167 = vrot.slane %v3166, 1
        %v3168 = vmax.f32 %v3166, %v3167
        %v3169 = vsel %vm3084, %v2998, -inf
        %v3170 = vrot.slane %v3169, 4
        %v3171 = vmax.f32 %v3169, %v3170
        %v3172 = vrot.slane %v3171, 2
        %v3173 = vmax.f32 %v3171, %v3172
        %v3174 = vrot.slane %v3173, 1
        %v3175 = vmax.f32 %v3173, %v3174
        %v3176 = vsel %vm3084, %v3021, -inf
        %v3177 = vrot.slane %v3176, 4
        %v3178 = vmax.f32 %v3176, %v3177
        %v3179 = vrot.slane %v3178, 2
        %v3180 = vmax.f32 %v3178, %v3179
        %v3181 = vrot.slane %v3180, 1
        %v3182 = vmax.f32 %v3180, %v3181
        %v3183 = vsel %vm3084, %v3044, -inf
        %v3184 = vrot.slane %v3183, 4
        %v3185 = vmax.f32 %v3183, %v3184
        %v3186 = vrot.slane %v3185, 2
        %v3187 = vmax.f32 %v3185, %v3186
        %v3188 = vrot.slane %v3187, 1
        %v3189 = vmax.f32 %v3187, %v3188
        %v3190 = vsel %vm3084, %v3067, -inf
        %v3191 = vrot.slane %v3190, 4
        %v3192 = vmax.f32 %v3190, %v3191
        %v3193 = vrot.slane %v3192, 2
        %v3194 = vmax.f32 %v3192, %v3193
        %v3195 = vrot.slane %v3194, 1
        %v3196 = vmax.f32 %v3194, %v3195
        %v3197 = vld [vmem:[%s2] sm:$0x1]
        %v3199 = vlaneseq
        %v3200 = vshrl.u32 %v3199, 7
        %v3201 = vsub.s32 0, %v3200
        %v3202 = vrot.slane %v3197, %v3201
        %v3204 = vadd.f32 %v3091, %v3202
        %v3205 = vadd.f32 %v3098, %v3202
        %v3206 = vadd.f32 %v3105, %v3202
        %v3207 = vadd.f32 %v3112, %v3202
        %v3208 = vadd.f32 %v3119, %v3202
        %v3209 = vadd.f32 %v3126, %v3202
        %v3210 = vadd.f32 %v3133, %v3202
        %v3211 = vadd.f32 %v3140, %v3202
        %v3212 = vadd.f32 %v3147, %v3202
        %v3213 = vadd.f32 %v3154, %v3202
        %v3214 = vadd.f32 %v3161, %v3202
        %v3215 = vadd.f32 %v3168, %v3202
        %v3216 = vadd.f32 %v3175, %v3202
        %v3217 = vadd.f32 %v3182, %v3202
        %v3218 = vadd.f32 %v3189, %v3202
        %v3219 = vadd.f32 %v3196, %v3202
        %v3236 = vrot.slane %v3205, 7
        %vm3237 = vcmask 1041409
        %v3238 = vsel %vm3237, %v3236, %v3204
        %v3239 = vrot.slane %v3206, 6
        %vm3240 = vcmask 1042434
        %v3241 = vsel %vm3240, %v3239, %v3238
        %v3242 = vrot.slane %v3207, 5
        %vm3243 = vcmask 1043459
        %v3244 = vsel %vm3243, %v3242, %v3241
        %v3245 = vrot.slane %v3208, 4
        %vm3246 = vcmask 1044484
        %v3247 = vsel %vm3246, %v3245, %v3244
        %v3248 = vrot.slane %v3209, 3
        %vm3249 = vcmask 1045509
        %v3250 = vsel %vm3249, %v3248, %v3247
        %v3251 = vrot.slane %v3210, 2
        %vm3252 = vcmask 1046534
        %v3253 = vsel %vm3252, %v3251, %v3250
        %v3254 = vrot.slane %v3211, 1
        %vm3255 = vcmask 1047559
        %v3256 = vsel %vm3255, %v3254, %v3253
        %v3257 = vrot.slane %v3213, 7
        %v3258 = vsel %vm3237, %v3257, %v3212
        %v3259 = vrot.slane %v3214, 6
        %v3260 = vsel %vm3240, %v3259, %v3258
        %v3261 = vrot.slane %v3215, 5
        %v3262 = vsel %vm3243, %v3261, %v3260
        %v3263 = vrot.slane %v3216, 4
        %v3264 = vsel %vm3246, %v3263, %v3262
        %v3265 = vrot.slane %v3217, 3
        %v3266 = vsel %vm3249, %v3265, %v3264
        %v3267 = vrot.slane %v3218, 2
        %v3268 = vsel %vm3252, %v3267, %v3266
        %v3269 = vrot.slane %v3219, 1
        %v3270 = vsel %vm3255, %v3269, %v3268
        %3273 = vst [vmem:[%s164] sm:$0xff] %v3256
        %3274 = vst [vmem:[%s164 + $0x8] sm:$0xff] %v3270
        %s3275 = sand.u32 %s93, 1
        %s3276 = scalar_lea.sflag [#allocation3], %s3275
        %s3277 = sand.u32 %s93, 1
        %s3278 = smul.addr %s3277, 16
        %s3279 = scalar_lea.vmem [#allocation2], %s3278
        // Predicated region
        $region33: #{tpu_custom_call.1} parent=31 // pred_check
          %p3280 = pneg %p103
        $region34: #{tpu_custom_call.1} parent=31 // pred_check_branch
          %3282 = sbr.rel (%p3280) target = $region36
        $region35: #{tpu_custom_call.1} parent=31 // pred_region
          %s3283 = smul.u32 2, %s17
          %s3285 = ssub.s32 256, 256
          %3286 = vsyncadd %s3276, %s3285
          %s3287 = smul.addr %s3283, 128
          %s3288 = scalar_lea.hbm %s3, %s3287
          %s3289 = sshll.u32 %s3279, 4
          %s3290 = int_to_ptr.vmem [resolvable:$true] %s3289
          %3295 = dma.vmem_to_hbm [thread:$0]  %s3290, 256, %s3288, %s3276, 128, 128, 8
        $region36: #{tpu_custom_call.1} parent=31 // pred_fallthru
          _
      $region32: #{tpu_custom_call.1} parent=5 // pred_fallthru
        _
      %p3296 = scmp.le.s32.totalorder 2, %s12
      // Predicated region
      $region37: #{tpu_custom_call.1} parent=5 // pred_check
        %p3297 = pneg %p3296
      $region38: #{tpu_custom_call.1} parent=5 // pred_check_branch
        %3299 = sbr.rel (%p3297) target = $region40
      $region39: #{tpu_custom_call.1} parent=5 // pred_region
        %s3300 = ssub.s32 %s12, 2
        // Predicated region
        $region41: #{tpu_custom_call.1} parent=39 // pred_check
          %p3301 = pneg %p109
        $region42: #{tpu_custom_call.1} parent=39 // pred_check_branch
          %3303 = sbr.rel (%p3301) target = $region44
        $region43: #{tpu_custom_call.1} parent=39 // pred_region
          %s3304 = sand.u32 %s94, 1
          %s3305 = scalar_lea.sflag [#allocation3], %s3304
          %s3306 = sand.u32 %s94, 1
          %s3307 = smul.addr %s3306, 16
          %s3308 = scalar_lea.vmem [#allocation2], %s3307
          %3309 = dma.done %s3305, 256
        $region44: #{tpu_custom_call.1} parent=39 // pred_fallthru
          _
      $region40: #{tpu_custom_call.1} parent=5 // pred_fallthru
        _
    $region6: #{tpu_custom_call.1} parent=1 // loop_footer
      %s16 = sadd.s32 1, %s12
    $region7: #{tpu_custom_call.1} parent=1 // loop_footer_branch
      %11 = sbr.rel target = $region3
    $region8: #{tpu_custom_call.1} parent=1 // loop_exit
      _
    %3310 = vsyncpa [#allocation3], 1
    %s3311 = scalar_lea.sflag [#allocation3], 1
    %3312 = vsyncpa %s3311, 1

</llo_original>
